<compile_context>
chip_gen: v5e
topology: v5e:2x2
jax: 0.10.0
libtpu: 0.0.40
codegen_flags: <defaults>
</compile_context>

<pallas_src>
import numpy as np
import jax
import jax.numpy as jnp
from jax.experimental import pallas as pl
from jax.experimental.pallas import tpu as pltpu

INPUT_FEATURES = 64
NUM_FEATURES = 32
TILE_N = 512  # lane-dim tile (multiple of 128); sweep 512..2048 for large N


def _make_kernel(quantization_bias):
    pi = float(np.pi)
    half_pi = float(0.5 * np.pi)

    def kernel(x_ref, w1s_ref, w1c_ref, w1s2_ref, w1c2_ref, b1_ref,
               w2_ref, b2_ref, w3_ref, b3_ref, out_ref):
        # x_ref: (D, T) normalized positions, positions on lanes.
        a = pi * x_ref[...]                       # (D, T)
        s = jnp.sin(a)                            # sin(pi x)          (EUP)
        c = jnp.sin(a + half_pi)                  # cos(pi x)          (EUP)
        s2 = 2.0 * s * c                          # sin(2 pi x)        (VALU)
        c2 = 1.0 - 2.0 * (s * s)                  # cos(2 pi x)        (VALU)

        # Layer 1: Linear(4D -> NF) expressed as 4 small dots (K = D each),
        # weights pre-sliced/transposed so no concat/pad is needed in-kernel.
        h1 = (jnp.dot(w1s_ref[...], s, preferred_element_type=jnp.float32)
              + jnp.dot(w1c_ref[...], c, preferred_element_type=jnp.float32)
              + jnp.dot(w1s2_ref[...], s2, preferred_element_type=jnp.float32)
              + jnp.dot(w1c2_ref[...], c2, preferred_element_type=jnp.float32)
              + b1_ref[...])
        h1 = jnp.maximum(h1, 0.0)                 # (NF, T)

        # Layer 2: Linear(NF -> NF)
        h2 = jnp.maximum(
            jnp.dot(w2_ref[...], h1, preferred_element_type=jnp.float32)
            + b2_ref[...], 0.0)                   # (NF, T)

        # Layer 3: Linear(NF -> 1) as a sublane reduction (avoids a degenerate
        # M=1 matmul); output stays lane-dense (1, T).
        q = jnp.sum(h2 * w3_ref[...], axis=0, keepdims=True) + b3_ref[...]
        q = jnp.maximum(q, 0.0)                   # (1, T)

        out_ref[...] = quantization_bias - q

    return kernel


def init_params(key, input_features=INPUT_FEATURES, num_features=NUM_FEATURES):
    """Deterministic Linear-layer init (uniform +-1/sqrt(fan_in), like torch)."""
    ks = jax.random.split(key, 6)

    def lin(kw, kb, fan_in, fan_out):
        bound = 1.0 / np.sqrt(fan_in)
        w = jax.random.uniform(kw, (fan_in, fan_out), jnp.float32, -bound, bound)
        b = jax.random.uniform(kb, (fan_out,), jnp.float32, -bound, bound)
        return w, b

    w1, b1 = lin(ks[0], ks[1], input_features, num_features)
    w2, b2 = lin(ks[2], ks[3], num_features, num_features)
    w3, b3 = lin(ks[4], ks[5], num_features, 1)
    return (w1, b1, w2, b2, w3, b3)


def quantization_mlp_forward(module_id, weights_shape, params, *,
                             num_modules, quantization_bias=10.0,
                             input_features=INPUT_FEATURES, tile_n=TILE_N):
    weights_shape = tuple(int(d) for d in weights_shape)
    D = len(weights_shape) + 1          # module dim + weight dims
    assert 4 * D <= input_features
    assert module_id.shape == (1,)

    N = int(np.prod(weights_shape))
    n_tiles = (N + tile_n - 1) // tile_n
    N_pad = n_tiles * tile_n

    # --- glue: compact normalized positions, transposed to (D, N_pad) ---
    ranges = [module_id.astype(jnp.float32)] + [
        jnp.arange(d, dtype=jnp.float32) for d in weights_shape]
    pos = jnp.stack(jnp.meshgrid(*ranges, indexing="ij"), axis=0).reshape(D, N)
    norm = jnp.asarray((num_modules,) + weights_shape,
                       dtype=jnp.float32).reshape(D, 1)
    x = (pos + 0.5) / norm                                          # (D, N)
    x = jnp.pad(x, ((0, 0), (0, N_pad - N)))                        # (D, N_pad)

    w1, b1, w2, b2, w3, b3 = params
    nf = w2.shape[0]

    # Slice + transpose layer-1 weights per encoding slot k (feature 4*j + k).
    # Rows of w1 beyond 4*D only ever multiplied zero padding -> dropped.
    idx = np.arange(D) * 4
    w1s = w1[idx + 0, :].T                                          # (NF, D)
    w1c = w1[idx + 1, :].T
    w1s2 = w1[idx + 2, :].T
    w1c2 = w1[idx + 3, :].T
    w2t = w2.T                                                      # (NF, NF)
    b1c = b1.reshape(nf, 1)
    b2c = b2.reshape(nf, 1)
    w3c = w3.reshape(nf, 1)
    b3c = b3.reshape(1, 1)

    def full(shape):
        return pl.BlockSpec(shape, lambda i, _nd=len(shape): (0,) * _nd)

    out = pl.pallas_call(
        _make_kernel(float(quantization_bias)),
        out_shape=jax.ShapeDtypeStruct((1, N_pad), jnp.float32),
        grid_spec=pltpu.PrefetchScalarGridSpec(
            num_scalar_prefetch=0,
            grid=(n_tiles,),
            in_specs=[
                pl.BlockSpec((D, tile_n), lambda i: (0, i)),        # positions
                full((nf, D)), full((nf, D)),                       # w1 slot 0,1
                full((nf, D)), full((nf, D)),                       # w1 slot 2,3
                full((nf, 1)),                                      # b1
                full((nf, nf)), full((nf, 1)),                      # w2.T, b2
                full((nf, 1)), full((1, 1)),                        # w3, b3
            ],
            out_specs=pl.BlockSpec((1, tile_n), lambda i: (0, i)),
        ),
        compiler_params=pltpu.CompilerParams(
            dimension_semantics=("parallel",)),
    )(x, w1s, w1c, w1s2, w1c2, b1c, w2t, b2c, w3c, b3c)

    return out[0, :N].reshape(weights_shape)


def _reference(module_id, weights_shape, params, num_modules, quantization_bias,
               input_features=INPUT_FEATURES):
    """Pure-JAX mirror of the PyTorch forward, for verification."""
    weights_shape = tuple(int(d) for d in weights_shape)
    D = len(weights_shape) + 1
    ranges = [module_id.astype(jnp.float32)] + [
        jnp.arange(d, dtype=jnp.float32) for d in weights_shape]
    pos = jnp.stack(jnp.meshgrid(*ranges, indexing="ij"), axis=-1).reshape(-1, D)
    norm = jnp.asarray((num_modules,) + weights_shape, jnp.float32)
    x = (pos + 0.5) / norm
    enc = jnp.stack([jnp.sin(np.pi * x), jnp.cos(np.pi * x),
                     jnp.sin(2 * np.pi * x), jnp.cos(2 * np.pi * x)], axis=-1)
    enc = enc.reshape(enc.shape[0], -1)
    enc = jnp.pad(enc, ((0, 0), (0, input_features - enc.shape[-1])))
    w1, b1, w2, b2, w3, b3 = params
    h = jnp.maximum(enc @ w1 + b1, 0.0)
    h = jnp.maximum(h @ w2 + b2, 0.0)
    q = jnp.maximum(h @ w3 + b3, 0.0)
    return quantization_bias - q.reshape(weights_shape)


if __name__ == "__main__":
    key = jax.random.PRNGKey(0)
    params = init_params(key)

    num_modules = 6
    weights_shape = (8, 16, 8)                 # N = 1024 -> 2 parallel grid steps
    module_id = jnp.array([3.0], dtype=jnp.float32)

    out = quantization_mlp_forward(module_id, weights_shape, params,
                                   num_modules=num_modules,
                                   quantization_bias=10.0)
    out = jax.block_until_ready(out)

    ref = _reference(module_id, weights_shape, params, num_modules, 10.0)
    assert out.shape == weights_shape
    assert np.allclose(np.asarray(out), np.asarray(ref), atol=1e-4, rtol=1e-4)
    print("KERNEL_OK")
</pallas_src>

<mosaic_0001>
module attributes {stable_mosaic.version = 11 : i64} {
  func.func @kernel(%arg0: i32, %arg1: memref<4x512xf32, #tpu.memory_space<vmem>>, %arg2: memref<32x4xf32, #tpu.memory_space<vmem>>, %arg3: memref<32x4xf32, #tpu.memory_space<vmem>>, %arg4: memref<32x4xf32, #tpu.memory_space<vmem>>, %arg5: memref<32x4xf32, #tpu.memory_space<vmem>>, %arg6: memref<32x1xf32, #tpu.memory_space<vmem>>, %arg7: memref<32x32xf32, #tpu.memory_space<vmem>>, %arg8: memref<32x1xf32, #tpu.memory_space<vmem>>, %arg9: memref<32x1xf32, #tpu.memory_space<vmem>>, %arg10: memref<1x1xf32, #tpu.memory_space<vmem>>, %arg11: memref<1x512xf32, #tpu.memory_space<vmem>>) attributes {dimension_semantics = [#tpu.dimension_semantics<parallel>], iteration_bounds = array<i64: 2>, scalar_prefetch = 0 : i64, scratch_operands = 0 : i64, tpu.core_type = #tpu.core_type<tc>, window_params = [{transform_indices = @transform_0, window_bounds = array<i64: 4, 512>}, {pipeline_mode = #tpu.pipeline_mode<synchronous>, transform_indices = @transform_1, window_bounds = array<i64: 32, 4>}, {pipeline_mode = #tpu.pipeline_mode<synchronous>, transform_indices = @transform_2, window_bounds = array<i64: 32, 4>}, {pipeline_mode = #tpu.pipeline_mode<synchronous>, transform_indices = @transform_3, window_bounds = array<i64: 32, 4>}, {pipeline_mode = #tpu.pipeline_mode<synchronous>, transform_indices = @transform_4, window_bounds = array<i64: 32, 4>}, {pipeline_mode = #tpu.pipeline_mode<synchronous>, transform_indices = @transform_5, window_bounds = array<i64: 32, 1>}, {pipeline_mode = #tpu.pipeline_mode<synchronous>, transform_indices = @transform_6, window_bounds = array<i64: 32, 32>}, {pipeline_mode = #tpu.pipeline_mode<synchronous>, transform_indices = @transform_7, window_bounds = array<i64: 32, 1>}, {pipeline_mode = #tpu.pipeline_mode<synchronous>, transform_indices = @transform_8, window_bounds = array<i64: 32, 1>}, {pipeline_mode = #tpu.pipeline_mode<synchronous>, transform_indices = @transform_9, window_bounds = array<i64: 1, 1>}, {transform_indices = @transform_10, window_bounds = array<i64: 1, 512>}]} {
    %c0 = arith.constant 0 : index
    %c0_0 = arith.constant 0 : index
    %0 = vector.load %arg1[%c0, %c0_0] : memref<4x512xf32, #tpu.memory_space<vmem>>, vector<4x512xf32>
    %cst = arith.constant 3.14159274 : f32
    %1 = vector.broadcast %cst : f32 to vector<4x512xf32>
    %2 = arith.mulf %1, %0 : vector<4x512xf32>
    %3 = math.sin %2 : vector<4x512xf32>
    %cst_1 = arith.constant 1.57079637 : f32
    %4 = vector.broadcast %cst_1 : f32 to vector<4x512xf32>
    %5 = arith.addf %2, %4 : vector<4x512xf32>
    %6 = math.sin %5 : vector<4x512xf32>
    %cst_2 = arith.constant 2.000000e+00 : f32
    %7 = vector.broadcast %cst_2 : f32 to vector<4x512xf32>
    %8 = arith.mulf %7, %3 : vector<4x512xf32>
    %9 = arith.mulf %8, %6 : vector<4x512xf32>
    %10 = arith.mulf %3, %3 : vector<4x512xf32>
    %cst_3 = arith.constant 2.000000e+00 : f32
    %11 = vector.broadcast %cst_3 : f32 to vector<4x512xf32>
    %12 = arith.mulf %11, %10 : vector<4x512xf32>
    %cst_4 = arith.constant 1.000000e+00 : f32
    %13 = vector.broadcast %cst_4 : f32 to vector<4x512xf32>
    %14 = arith.subf %13, %12 : vector<4x512xf32>
    %c0_5 = arith.constant 0 : index
    %c0_6 = arith.constant 0 : index
    %15 = vector.load %arg2[%c0_5, %c0_6] : memref<32x4xf32, #tpu.memory_space<vmem>>, vector<32x4xf32>
    %cst_7 = arith.constant dense<0.000000e+00> : vector<32x512xf32>
    %16 = tpu.matmul %15, %3, %cst_7 {dimension_numbers = #tpu.dot_dimension_numbers<[1], [0], [0], [1], [0, 0, 1, 1], [], []>} : vector<32x4xf32>, vector<4x512xf32>, vector<32x512xf32> -> vector<32x512xf32>
    %c0_8 = arith.constant 0 : index
    %c0_9 = arith.constant 0 : index
    %17 = vector.load %arg3[%c0_8, %c0_9] : memref<32x4xf32, #tpu.memory_space<vmem>>, vector<32x4xf32>
    %cst_10 = arith.constant dense<0.000000e+00> : vector<32x512xf32>
    %18 = tpu.matmul %17, %6, %cst_10 {dimension_numbers = #tpu.dot_dimension_numbers<[1], [0], [0], [1], [0, 0, 1, 1], [], []>} : vector<32x4xf32>, vector<4x512xf32>, vector<32x512xf32> -> vector<32x512xf32>
    %19 = arith.addf %16, %18 : vector<32x512xf32>
    %c0_11 = arith.constant 0 : index
    %c0_12 = arith.constant 0 : index
    %20 = vector.load %arg4[%c0_11, %c0_12] : memref<32x4xf32, #tpu.memory_space<vmem>>, vector<32x4xf32>
    %cst_13 = arith.constant dense<0.000000e+00> : vector<32x512xf32>
    %21 = tpu.matmul %20, %9, %cst_13 {dimension_numbers = #tpu.dot_dimension_numbers<[1], [0], [0], [1], [0, 0, 1, 1], [], []>} : vector<32x4xf32>, vector<4x512xf32>, vector<32x512xf32> -> vector<32x512xf32>
    %22 = arith.addf %19, %21 : vector<32x512xf32>
    %c0_14 = arith.constant 0 : index
    %c0_15 = arith.constant 0 : index
    %23 = vector.load %arg5[%c0_14, %c0_15] : memref<32x4xf32, #tpu.memory_space<vmem>>, vector<32x4xf32>
    %cst_16 = arith.constant dense<0.000000e+00> : vector<32x512xf32>
    %24 = tpu.matmul %23, %14, %cst_16 {dimension_numbers = #tpu.dot_dimension_numbers<[1], [0], [0], [1], [0, 0, 1, 1], [], []>} : vector<32x4xf32>, vector<4x512xf32>, vector<32x512xf32> -> vector<32x512xf32>
    %25 = arith.addf %22, %24 : vector<32x512xf32>
    %c0_17 = arith.constant 0 : index
    %c0_18 = arith.constant 0 : index
    %26 = vector.load %arg6[%c0_17, %c0_18] : memref<32x1xf32, #tpu.memory_space<vmem>>, vector<32x1xf32>
    %27 = vector.broadcast %26 : vector<32x1xf32> to vector<32x512xf32>
    %28 = arith.addf %25, %27 : vector<32x512xf32>
    %cst_19 = arith.constant 0.000000e+00 : f32
    %29 = vector.broadcast %cst_19 : f32 to vector<32x512xf32>
    %30 = arith.maximumf %28, %29 : vector<32x512xf32>
    %c0_20 = arith.constant 0 : index
    %c0_21 = arith.constant 0 : index
    %31 = vector.load %arg7[%c0_20, %c0_21] : memref<32x32xf32, #tpu.memory_space<vmem>>, vector<32x32xf32>
    %cst_22 = arith.constant dense<0.000000e+00> : vector<32x512xf32>
    %32 = tpu.matmul %31, %30, %cst_22 {dimension_numbers = #tpu.dot_dimension_numbers<[1], [0], [0], [1], [0, 0, 1, 1], [], []>} : vector<32x32xf32>, vector<32x512xf32>, vector<32x512xf32> -> vector<32x512xf32>
    %c0_23 = arith.constant 0 : index
    %c0_24 = arith.constant 0 : index
    %33 = vector.load %arg8[%c0_23, %c0_24] : memref<32x1xf32, #tpu.memory_space<vmem>>, vector<32x1xf32>
    %34 = vector.broadcast %33 : vector<32x1xf32> to vector<32x512xf32>
    %35 = arith.addf %32, %34 : vector<32x512xf32>
    %cst_25 = arith.constant 0.000000e+00 : f32
    %36 = vector.broadcast %cst_25 : f32 to vector<32x512xf32>
    %37 = arith.maximumf %35, %36 : vector<32x512xf32>
    %c0_26 = arith.constant 0 : index
    %c0_27 = arith.constant 0 : index
    %38 = vector.load %arg9[%c0_26, %c0_27] : memref<32x1xf32, #tpu.memory_space<vmem>>, vector<32x1xf32>
    %39 = vector.broadcast %38 : vector<32x1xf32> to vector<32x512xf32>
    %40 = arith.mulf %37, %39 : vector<32x512xf32>
    %cst_28 = arith.constant dense<0.000000e+00> : vector<512xf32>
    %41 = vector.multi_reduction <add>, %40, %cst_28 [0] : vector<32x512xf32> to vector<512xf32>
    %42 = vector.shape_cast %41 : vector<512xf32> to vector<1x512xf32>
    %c0_29 = arith.constant 0 : index
    %c0_30 = arith.constant 0 : index
    %43 = vector.load %arg10[%c0_29, %c0_30] : memref<1x1xf32, #tpu.memory_space<vmem>>, vector<1x1xf32>
    %44 = vector.broadcast %43 : vector<1x1xf32> to vector<1x512xf32>
    %45 = arith.addf %42, %44 : vector<1x512xf32>
    %cst_31 = arith.constant 0.000000e+00 : f32
    %46 = vector.broadcast %cst_31 : f32 to vector<1x512xf32>
    %47 = arith.maximumf %45, %46 : vector<1x512xf32>
    %cst_32 = arith.constant 1.000000e+01 : f32
    %48 = vector.broadcast %cst_32 : f32 to vector<1x512xf32>
    %49 = arith.subf %48, %47 : vector<1x512xf32>
    %c0_33 = arith.constant 0 : index
    %c0_34 = arith.constant 0 : index
    %50 = vector.load %arg11[%c0_33, %c0_34] : memref<1x512xf32, #tpu.memory_space<vmem>>, vector<1x512xf32>
    tpu.vector_store %arg11[%c0_33, %c0_34], %49 {strides = array<i32>} : memref<1x512xf32, #tpu.memory_space<vmem>>, vector<1x512xf32>,
    return
  }
  func.func @transform_0(%arg0: i32) -> (i32, i32) {
    %c0_i32 = arith.constant 0 : i32
    %c0_i32_0 = arith.constant 0 : i32
    return %c0_i32, %arg0 : i32, i32
  }
  func.func @transform_1(%arg0: i32) -> (i32, i32) {
    %c0_i32 = arith.constant 0 : i32
    %c0_i32_0 = arith.constant 0 : i32
    %c0_i32_1 = arith.constant 0 : i32
    return %c0_i32, %c0_i32_0 : i32, i32
  }
  func.func @transform_2(%arg0: i32) -> (i32, i32) {
    %c0_i32 = arith.constant 0 : i32
    %c0_i32_0 = arith.constant 0 : i32
    %c0_i32_1 = arith.constant 0 : i32
    return %c0_i32, %c0_i32_0 : i32, i32
  }
  func.func @transform_3(%arg0: i32) -> (i32, i32) {
    %c0_i32 = arith.constant 0 : i32
    %c0_i32_0 = arith.constant 0 : i32
    %c0_i32_1 = arith.constant 0 : i32
    return %c0_i32, %c0_i32_0 : i32, i32
  }
  func.func @transform_4(%arg0: i32) -> (i32, i32) {
    %c0_i32 = arith.constant 0 : i32
    %c0_i32_0 = arith.constant 0 : i32
    %c0_i32_1 = arith.constant 0 : i32
    return %c0_i32, %c0_i32_0 : i32, i32
  }
  func.func @transform_5(%arg0: i32) -> (i32, i32) {
    %c0_i32 = arith.constant 0 : i32
    %c0_i32_0 = arith.constant 0 : i32
    %c0_i32_1 = arith.constant 0 : i32
    return %c0_i32, %c0_i32_0 : i32, i32
  }
  func.func @transform_6(%arg0: i32) -> (i32, i32) {
    %c0_i32 = arith.constant 0 : i32
    %c0_i32_0 = arith.constant 0 : i32
    %c0_i32_1 = arith.constant 0 : i32
    return %c0_i32, %c0_i32_0 : i32, i32
  }
  func.func @transform_7(%arg0: i32) -> (i32, i32) {
    %c0_i32 = arith.constant 0 : i32
    %c0_i32_0 = arith.constant 0 : i32
    %c0_i32_1 = arith.constant 0 : i32
    return %c0_i32, %c0_i32_0 : i32, i32
  }
  func.func @transform_8(%arg0: i32) -> (i32, i32) {
    %c0_i32 = arith.constant 0 : i32
    %c0_i32_0 = arith.constant 0 : i32
    %c0_i32_1 = arith.constant 0 : i32
    return %c0_i32, %c0_i32_0 : i32, i32
  }
  func.func @transform_9(%arg0: i32) -> (i32, i32) {
    %c0_i32 = arith.constant 0 : i32
    %c0_i32_0 = arith.constant 0 : i32
    %c0_i32_1 = arith.constant 0 : i32
    return %c0_i32, %c0_i32_0 : i32, i32
  }
  func.func @transform_10(%arg0: i32) -> (i32, i32) {
    %c0_i32 = arith.constant 0 : i32
    %c0_i32_0 = arith.constant 0 : i32
    return %c0_i32, %arg0 : i32, i32
  }
}

</mosaic_0001>

<llo_original>
// kernel: tpu_custom_call.1
$region0: #{tpu_custom_call.1}
  #allocation0 [shape = 'u32[]', space=smem, size = 0x4, offset = 0x4, fixed_abs, tag = 'smem constant byte address 0x4 - core index']
  #allocation1 [shape = 'u32[72,128]{1,0:T(1,128)}', space=vmem, size = 0x9000, scoped, tag = 'internal scratch']
  #allocation2 [shape = 'f32[1,1]{1,0:T(1,128)S(1)}', space=vmem, size = 0x200, scoped, tag = 'scoped memory for tpu_custom_call.1']
  %s0 = inlined_call_operand.vmem [shape: f32[4,1024], index: 0, kind: input, shape index: {}]
  %s1 = inlined_call_operand.vmem [shape: f32[32,4], index: 1, kind: input, shape index: {}]
  %s2 = inlined_call_operand.vmem [shape: f32[32,4], index: 2, kind: input, shape index: {}]
  %s3 = inlined_call_operand.vmem [shape: f32[32,4], index: 3, kind: input, shape index: {}]
  %s4 = inlined_call_operand.vmem [shape: f32[32,4], index: 4, kind: input, shape index: {}]
  %s5 = inlined_call_operand.vmem [shape: f32[32,1], index: 5, kind: input, shape index: {}]
  %s6 = inlined_call_operand.vmem [shape: f32[32,32], index: 6, kind: input, shape index: {}]
  %s7 = inlined_call_operand.vmem [shape: f32[32,1], index: 7, kind: input, shape index: {}]
  %s8 = inlined_call_operand.vmem [shape: f32[32,1], index: 8, kind: input, shape index: {}]
  %s9 = inlined_call_operand.<no memory space> [shape: f32[1,1], index: 9, kind: input, shape index: {}]
  %s10 = inlined_call_operand.hbm [shape: f32[1,1024], index: 10, kind: output, shape index: {}]
  %s11 = sld [smem:[#allocation0]]
  $region73: #{tpu_custom_call.1} parent=0
    _
  %s13 = ssub.s32 1, %s11
  %s14 = scalar_select 0, %s13, %s11
  %v15 = vstv %s9
  %16 = vst [vmem:[#allocation2] sm:$0x1] %v15
  $region1: #{tpu_custom_call.1} parent=0
    #allocation3 [shape = 'u8[4096]{0}', space=vmem, size = 0x1000, scoped, tag = 'output window, operand 0']
    #allocation4 [shape = 's32[2]{0}', space=sflag, size = 0x8, scoped, tag = 'scoped memory for tpu_custom_call.1']
    %17 = vsyncpa [#allocation4], 0
    %s18 = scalar_lea.sflag [#allocation4], 1
    %19 = vsyncpa %s18, 0
    loop: start=0, step=1, limit=4
    $region2: #{tpu_custom_call.1} parent=1 // loop_pre_header
      _
    $region3: #{tpu_custom_call.1} parent=1 // loop_header
      %s21 = sphi 0, %s25
      %p22 = scmp.ge.s32.totalorder %s21, 4
      %s31 = sphi 0, %s33
      %s34 = sphi 0, %s31
      %s35 = sphi 0, %s34
      %s51 = sphi 0, %s35
      %s55 = sphi 0, %s55
      %s57 = sphi 0, %s55
      %s58 = sphi 0, %s57
      %s72 = sphi 0, %s58
      %s76 = sphi 0, %s76
      %s78 = sphi 0, %s76
      %s79 = sphi 0, %s78
      %s93 = sphi 0, %s79
      %s97 = sphi 0, %s97
      %s99 = sphi 0, %s97
      %s100 = sphi 0, %s99
      %s114 = sphi 0, %s100
      %s118 = sphi 0, %s118
      %s120 = sphi 0, %s118
      %s121 = sphi 0, %s120
      %s135 = sphi 0, %s121
      %s139 = sphi 0, %s139
      %s141 = sphi 0, %s139
      %s142 = sphi 0, %s141
      %s156 = sphi 0, %s142
      %s160 = sphi 0, %s160
      %s162 = sphi 0, %s160
      %s163 = sphi 0, %s162
      %s177 = sphi 0, %s163
      %s181 = sphi 0, %s181
      %s183 = sphi 0, %s181
      %s184 = sphi 0, %s183
      %s198 = sphi 0, %s184
      %s202 = sphi 0, %s202
      %s204 = sphi 0, %s202
      %s205 = sphi 0, %s204
      %s219 = sphi 0, %s205
      %s223 = sphi 0, %s223
      %s225 = sphi 0, %s223
      %s226 = sphi 0, %s225
      %s240 = sphi 0, %s226
      %s246 = sphi 0, %s248
      %s249 = sphi 0, %s246
      %s250 = sphi 0, %s249
      %s266 = sphi 0, %s250
    $region4: #{tpu_custom_call.1} parent=1 // loop_header_branch
      %24 = sbr.rel (%p22) target = $region8
    $region5: #{tpu_custom_call.1} parent=1 // loop_body
      %s26 = ssub.s32 %s21, 1
      %s27 = ssub.s32 %s21, 2
      %s28 = sadd.s32 %s21, 1
      %s29 = ssub.s32 %s21, %s28
      %p30 = scmp.eq.s32.totalorder %s29, 0
      %s32 = sadd.s32 %s31, 1
      %s33 = scalar_select %p30, %s31, %s32
      %p36 = pneg %p30
      %p37 = scmp.eq.s32.totalorder %s21, 1
      %p38 = por %p36, %p37
      %p39 = scmp.ne.s32.totalorder %s31, %s34
      %p40 = scmp.eq.s32.totalorder %s21, 0
      %p41 = por %p39, %p40
      %p42 = scmp.ne.s32.totalorder %s31, %s34
      %p43 = scmp.eq.s32.totalorder %s26, 1
      %p44 = por %p42, %p43
      %p45 = scmp.ne.s32.totalorder %s34, %s35
      %p46 = scmp.eq.s32.totalorder %s26, 0
      %p47 = por %p45, %p46
      %p48 = scmp.ne.s32.totalorder %s34, %s35
      %p49 = scmp.eq.s32.totalorder %s27, 1
      %p50 = por %p48, %p49
      %p52 = scmp.ne.s32.totalorder %s35, %s51
      %p53 = scmp.eq.s32.totalorder %s27, 0
      %p54 = por %p52, %p53
      %s56 = sadd.s32 %s55, 1
      %p59 = scmp.eq.s32.totalorder %s21, 1
      %p60 = scmp.ne.s32.totalorder %s55, %s57
      %p61 = scmp.eq.s32.totalorder %s21, 0
      %p62 = por %p60, %p61
      %p63 = scmp.ne.s32.totalorder %s55, %s57
      %p64 = scmp.eq.s32.totalorder %s26, 1
      %p65 = por %p63, %p64
      %p66 = scmp.ne.s32.totalorder %s57, %s58
      %p67 = scmp.eq.s32.totalorder %s26, 0
      %p68 = por %p66, %p67
      %p69 = scmp.ne.s32.totalorder %s57, %s58
      %p70 = scmp.eq.s32.totalorder %s27, 1
      %p71 = por %p69, %p70
      %p73 = scmp.ne.s32.totalorder %s58, %s72
      %p74 = scmp.eq.s32.totalorder %s27, 0
      %p75 = por %p73, %p74
      %s77 = sadd.s32 %s76, 1
      %p80 = scmp.eq.s32.totalorder %s21, 1
      %p81 = scmp.ne.s32.totalorder %s76, %s78
      %p82 = scmp.eq.s32.totalorder %s21, 0
      %p83 = por %p81, %p82
      %p84 = scmp.ne.s32.totalorder %s76, %s78
      %p85 = scmp.eq.s32.totalorder %s26, 1
      %p86 = por %p84, %p85
      %p87 = scmp.ne.s32.totalorder %s78, %s79
      %p88 = scmp.eq.s32.totalorder %s26, 0
      %p89 = por %p87, %p88
      %p90 = scmp.ne.s32.totalorder %s78, %s79
      %p91 = scmp.eq.s32.totalorder %s27, 1
      %p92 = por %p90, %p91
      %p94 = scmp.ne.s32.totalorder %s79, %s93
      %p95 = scmp.eq.s32.totalorder %s27, 0
      %p96 = por %p94, %p95
      %s98 = sadd.s32 %s97, 1
      %p101 = scmp.eq.s32.totalorder %s21, 1
      %p102 = scmp.ne.s32.totalorder %s97, %s99
      %p103 = scmp.eq.s32.totalorder %s21, 0
      %p104 = por %p102, %p103
      %p105 = scmp.ne.s32.totalorder %s97, %s99
      %p106 = scmp.eq.s32.totalorder %s26, 1
      %p107 = por %p105, %p106
      %p108 = scmp.ne.s32.totalorder %s99, %s100
      %p109 = scmp.eq.s32.totalorder %s26, 0
      %p110 = por %p108, %p109
      %p111 = scmp.ne.s32.totalorder %s99, %s100
      %p112 = scmp.eq.s32.totalorder %s27, 1
      %p113 = por %p111, %p112
      %p115 = scmp.ne.s32.totalorder %s100, %s114
      %p116 = scmp.eq.s32.totalorder %s27, 0
      %p117 = por %p115, %p116
      %s119 = sadd.s32 %s118, 1
      %p122 = scmp.eq.s32.totalorder %s21, 1
      %p123 = scmp.ne.s32.totalorder %s118, %s120
      %p124 = scmp.eq.s32.totalorder %s21, 0
      %p125 = por %p123, %p124
      %p126 = scmp.ne.s32.totalorder %s118, %s120
      %p127 = scmp.eq.s32.totalorder %s26, 1
      %p128 = por %p126, %p127
      %p129 = scmp.ne.s32.totalorder %s120, %s121
      %p130 = scmp.eq.s32.totalorder %s26, 0
      %p131 = por %p129, %p130
      %p132 = scmp.ne.s32.totalorder %s120, %s121
      %p133 = scmp.eq.s32.totalorder %s27, 1
      %p134 = por %p132, %p133
      %p136 = scmp.ne.s32.totalorder %s121, %s135
      %p137 = scmp.eq.s32.totalorder %s27, 0
      %p138 = por %p136, %p137
      %s140 = sadd.s32 %s139, 1
      %p143 = scmp.eq.s32.totalorder %s21, 1
      %p144 = scmp.ne.s32.totalorder %s139, %s141
      %p145 = scmp.eq.s32.totalorder %s21, 0
      %p146 = por %p144, %p145
      %p147 = scmp.ne.s32.totalorder %s139, %s141
      %p148 = scmp.eq.s32.totalorder %s26, 1
      %p149 = por %p147, %p148
      %p150 = scmp.ne.s32.totalorder %s141, %s142
      %p151 = scmp.eq.s32.totalorder %s26, 0
      %p152 = por %p150, %p151
      %p153 = scmp.ne.s32.totalorder %s141, %s142
      %p154 = scmp.eq.s32.totalorder %s27, 1
      %p155 = por %p153, %p154
      %p157 = scmp.ne.s32.totalorder %s142, %s156
      %p158 = scmp.eq.s32.totalorder %s27, 0
      %p159 = por %p157, %p158
      %s161 = sadd.s32 %s160, 1
      %p164 = scmp.eq.s32.totalorder %s21, 1
      %p165 = scmp.ne.s32.totalorder %s160, %s162
      %p166 = scmp.eq.s32.totalorder %s21, 0
      %p167 = por %p165, %p166
      %p168 = scmp.ne.s32.totalorder %s160, %s162
      %p169 = scmp.eq.s32.totalorder %s26, 1
      %p170 = por %p168, %p169
      %p171 = scmp.ne.s32.totalorder %s162, %s163
      %p172 = scmp.eq.s32.totalorder %s26, 0
      %p173 = por %p171, %p172
      %p174 = scmp.ne.s32.totalorder %s162, %s163
      %p175 = scmp.eq.s32.totalorder %s27, 1
      %p176 = por %p174, %p175
      %p178 = scmp.ne.s32.totalorder %s163, %s177
      %p179 = scmp.eq.s32.totalorder %s27, 0
      %p180 = por %p178, %p179
      %s182 = sadd.s32 %s181, 1
      %p185 = scmp.eq.s32.totalorder %s21, 1
      %p186 = scmp.ne.s32.totalorder %s181, %s183
      %p187 = scmp.eq.s32.totalorder %s21, 0
      %p188 = por %p186, %p187
      %p189 = scmp.ne.s32.totalorder %s181, %s183
      %p190 = scmp.eq.s32.totalorder %s26, 1
      %p191 = por %p189, %p190
      %p192 = scmp.ne.s32.totalorder %s183, %s184
      %p193 = scmp.eq.s32.totalorder %s26, 0
      %p194 = por %p192, %p193
      %p195 = scmp.ne.s32.totalorder %s183, %s184
      %p196 = scmp.eq.s32.totalorder %s27, 1
      %p197 = por %p195, %p196
      %p199 = scmp.ne.s32.totalorder %s184, %s198
      %p200 = scmp.eq.s32.totalorder %s27, 0
      %p201 = por %p199, %p200
      %s203 = sadd.s32 %s202, 1
      %p206 = scmp.eq.s32.totalorder %s21, 1
      %p207 = scmp.ne.s32.totalorder %s202, %s204
      %p208 = scmp.eq.s32.totalorder %s21, 0
      %p209 = por %p207, %p208
      %p210 = scmp.ne.s32.totalorder %s202, %s204
      %p211 = scmp.eq.s32.totalorder %s26, 1
      %p212 = por %p210, %p211
      %p213 = scmp.ne.s32.totalorder %s204, %s205
      %p214 = scmp.eq.s32.totalorder %s26, 0
      %p215 = por %p213, %p214
      %p216 = scmp.ne.s32.totalorder %s204, %s205
      %p217 = scmp.eq.s32.totalorder %s27, 1
      %p218 = por %p216, %p217
      %p220 = scmp.ne.s32.totalorder %s205, %s219
      %p221 = scmp.eq.s32.totalorder %s27, 0
      %p222 = por %p220, %p221
      %s224 = sadd.s32 %s223, 1
      %p227 = scmp.eq.s32.totalorder %s21, 1
      %p228 = scmp.ne.s32.totalorder %s223, %s225
      %p229 = scmp.eq.s32.totalorder %s21, 0
      %p230 = por %p228, %p229
      %p231 = scmp.ne.s32.totalorder %s223, %s225
      %p232 = scmp.eq.s32.totalorder %s26, 1
      %p233 = por %p231, %p232
      %p234 = scmp.ne.s32.totalorder %s225, %s226
      %p235 = scmp.eq.s32.totalorder %s26, 0
      %p236 = por %p234, %p235
      %p237 = scmp.ne.s32.totalorder %s225, %s226
      %p238 = scmp.eq.s32.totalorder %s27, 1
      %p239 = por %p237, %p238
      %p241 = scmp.ne.s32.totalorder %s226, %s240
      %p242 = scmp.eq.s32.totalorder %s27, 0
      %p243 = por %p241, %p242
      %s244 = ssub.s32 %s21, %s28
      %p245 = scmp.eq.s32.totalorder %s244, 0
      %s247 = sadd.s32 %s246, 1
      %s248 = scalar_select %p245, %s246, %s247
      %p251 = pneg %p245
      %p252 = scmp.eq.s32.totalorder %s21, 1
      %p253 = por %p251, %p252
      %p254 = scmp.ne.s32.totalorder %s246, %s249
      %p255 = scmp.eq.s32.totalorder %s21, 0
      %p256 = por %p254, %p255
      %p257 = scmp.ne.s32.totalorder %s246, %s249
      %p258 = scmp.eq.s32.totalorder %s26, 1
      %p259 = por %p257, %p258
      %p260 = scmp.ne.s32.totalorder %s249, %s250
      %p261 = scmp.eq.s32.totalorder %s26, 0
      %p262 = por %p260, %p261
      %p263 = scmp.ne.s32.totalorder %s249, %s250
      %p264 = scmp.eq.s32.totalorder %s27, 1
      %p265 = por %p263, %p264
      %p267 = scmp.ne.s32.totalorder %s250, %s266
      %p268 = scmp.eq.s32.totalorder %s27, 0
      %p269 = por %p267, %p268
      %p270 = scmp.le.s32.totalorder 1, %s21
      %p271 = scmp.lt.s32.totalorder %s21, 3
      %p272 = pnand %p270, %p271
      %p273 = pneg %p272
      // Predicated region
      $region9: #{tpu_custom_call.1} parent=5 // pred_check
        _
      $region10: #{tpu_custom_call.1} parent=5 // pred_check_branch
        %275 = sbr.rel (%p272) target = $region12
      $region11: #{tpu_custom_call.1} parent=5 // pred_region
        %s276 = ssub.s32 %s21, 1
        // Predicated region
        $region13: #{tpu_custom_call.1} parent=11 // pred_check
          %p277 = pneg %p68
        $region14: #{tpu_custom_call.1} parent=11 // pred_check_branch
          %279 = sbr.rel (%p277) target = $region16
        $region15: #{tpu_custom_call.1} parent=11 // pred_region
          _
        $region16: #{tpu_custom_call.1} parent=11 // pred_fallthru
          _
        // Predicated region
        $region17: #{tpu_custom_call.1} parent=11 // pred_check
          %p280 = pneg %p89
        $region18: #{tpu_custom_call.1} parent=11 // pred_check_branch
          %282 = sbr.rel (%p280) target = $region20
        $region19: #{tpu_custom_call.1} parent=11 // pred_region
          _
        $region20: #{tpu_custom_call.1} parent=11 // pred_fallthru
          _
        // Predicated region
        $region21: #{tpu_custom_call.1} parent=11 // pred_check
          %p283 = pneg %p110
        $region22: #{tpu_custom_call.1} parent=11 // pred_check_branch
          %285 = sbr.rel (%p283) target = $region24
        $region23: #{tpu_custom_call.1} parent=11 // pred_region
          _
        $region24: #{tpu_custom_call.1} parent=11 // pred_fallthru
          _
        // Predicated region
        $region25: #{tpu_custom_call.1} parent=11 // pred_check
          %p286 = pneg %p131
        $region26: #{tpu_custom_call.1} parent=11 // pred_check_branch
          %288 = sbr.rel (%p286) target = $region28
        $region27: #{tpu_custom_call.1} parent=11 // pred_region
          _
        $region28: #{tpu_custom_call.1} parent=11 // pred_fallthru
          _
        // Predicated region
        $region29: #{tpu_custom_call.1} parent=11 // pred_check
          %p289 = pneg %p152
        $region30: #{tpu_custom_call.1} parent=11 // pred_check_branch
          %291 = sbr.rel (%p289) target = $region32
        $region31: #{tpu_custom_call.1} parent=11 // pred_region
          _
        $region32: #{tpu_custom_call.1} parent=11 // pred_fallthru
          _
        // Predicated region
        $region33: #{tpu_custom_call.1} parent=11 // pred_check
          %p292 = pneg %p173
        $region34: #{tpu_custom_call.1} parent=11 // pred_check_branch
          %294 = sbr.rel (%p292) target = $region36
        $region35: #{tpu_custom_call.1} parent=11 // pred_region
          _
        $region36: #{tpu_custom_call.1} parent=11 // pred_fallthru
          _
        // Predicated region
        $region37: #{tpu_custom_call.1} parent=11 // pred_check
          %p295 = pneg %p194
        $region38: #{tpu_custom_call.1} parent=11 // pred_check_branch
          %297 = sbr.rel (%p295) target = $region40
        $region39: #{tpu_custom_call.1} parent=11 // pred_region
          _
        $region40: #{tpu_custom_call.1} parent=11 // pred_fallthru
          _
        // Predicated region
        $region41: #{tpu_custom_call.1} parent=11 // pred_check
          %p298 = pneg %p215
        $region42: #{tpu_custom_call.1} parent=11 // pred_check_branch
          %300 = sbr.rel (%p298) target = $region44
        $region43: #{tpu_custom_call.1} parent=11 // pred_region
          _
        $region44: #{tpu_custom_call.1} parent=11 // pred_fallthru
          _
        // Predicated region
        $region45: #{tpu_custom_call.1} parent=11 // pred_check
          %p301 = pneg %p236
        $region46: #{tpu_custom_call.1} parent=11 // pred_check_branch
          %303 = sbr.rel (%p301) target = $region48
        $region47: #{tpu_custom_call.1} parent=11 // pred_region
          _
        $region48: #{tpu_custom_call.1} parent=11 // pred_fallthru
          _
      $region12: #{tpu_custom_call.1} parent=5 // pred_fallthru
        _
      %p304 = scmp.lt.s32.totalorder %s21, 2
      // Predicated region
      $region49: #{tpu_custom_call.1} parent=5 // pred_check
        %p305 = pneg %p304
      $region50: #{tpu_custom_call.1} parent=5 // pred_check_branch
        %307 = sbr.rel (%p305) target = $region52
      $region51: #{tpu_custom_call.1} parent=5 // pred_region
        // Predicated region
        $region53: #{tpu_custom_call.1} parent=51 // pred_check
          %p308 = pneg %p41
        $region54: #{tpu_custom_call.1} parent=51 // pred_check_branch
          %310 = sbr.rel (%p308) target = $region56
        $region55: #{tpu_custom_call.1} parent=51 // pred_region
          %s311 = smul.u32 4, %s21
          %p312 = scmp.lt.s32.totalorder %s311, 7
          %s313 = scalar_select %p312, %s311, 7
          %s314 = smul.addr %s313, 4
          %s315 = scalar_lea.vmem %s0, %s314
          %s316 = smul.u32 4, %s21
        $region56: #{tpu_custom_call.1} parent=51 // pred_fallthru
          _
      $region52: #{tpu_custom_call.1} parent=5 // pred_fallthru
        _
      %p317 = scmp.le.s32.totalorder 1, %s21
      %p318 = scmp.lt.s32.totalorder %s21, 3
      %p319 = pnand %p317, %p318
      %p320 = pneg %p319
      // Predicated region
      $region57: #{tpu_custom_call.1} parent=5 // pred_check
        _
      $region58: #{tpu_custom_call.1} parent=5 // pred_check_branch
        %322 = sbr.rel (%p319) target = $region60
      $region59: #{tpu_custom_call.1} parent=5 // pred_region
        %s323 = ssub.s32 %s21, 1
        %s324 = smul.u32 4, %s26
        %p325 = scmp.lt.s32.totalorder %s324, 7
        %s326 = scalar_select %p325, %s324, 7
        %s327 = smul.addr %s326, 4
        %s328 = scalar_lea.vmem %s0, %s327
        %p329 = pneg %p47
        %p330 = pneg %p44
        %p331 = pneg %p68
        %p332 = pneg %p65
        %p333 = pneg %p89
        %p334 = pneg %p86
        %p335 = pneg %p110
        %p336 = pneg %p107
        %p337 = pneg %p131
        %p338 = pneg %p128
        %p339 = pneg %p152
        %p340 = pneg %p149
        %p341 = pneg %p173
        %p342 = pneg %p170
        %p343 = pneg %p194
        %p344 = pneg %p191
        %p345 = pneg %p215
        %p346 = pneg %p212
        %p347 = pneg %p236
        %p348 = pneg %p233
        %p349 = pneg %p262
        %p350 = pneg %p259
        %s351 = sand.u32 %s249, 1
        %s352 = scalar_lea.sflag [#allocation4], %s351
        %s353 = sand.u32 %s249, 1
        %s354 = smul.addr %s353, 4
        %s355 = scalar_lea.vmem [#allocation3], %s354
        %s356 = smul.u32 4, %s26
        %p357 = scmp.lt.s32.totalorder %s356, 7
        %s358 = scalar_select %p357, %s356, 7
        %s359 = smul.addr %s358, 4
        %s360 = scalar_lea.vmem %s0, %s359
        %s361 = smul.u32 4, %s26
        %s362 = smul.u32 4, %s26
        %v363 = vld [vmem:[%s360] sm:$0xff]
        %v364 = vld [vmem:[%s360 + $0x8] sm:$0xff]
        %v365 = vmul.f32 %v363, 3.1415927
        %v366 = vmul.f32 %v364, 3.1415927
        %v367 = vand.u32 2147483647, %v365
        %vm368 = vcmp.le.f32.partialorder %v367, 0.7853982
        %vm369 = vcmp.lt.s32.totalorder %v365, 0
        %v370 = vand.u32 %v365, 2139095040
        %v371 = vshrl.u32 %v370, 23
        %v372 = vsub.s32 %v371, 127
        %v373 = vand.u32 2147483647, %v365
        %v374 = vand.u32 %v373, 8388607
        %v375 = vor.u32 %v374, 8388608
        %v376 = vsub.s32 0, %v375
        %v377 = vadd.s32 %v372, 1
        %vm378 = vcmp.gt.s32.totalorder %v377, 0
        %v379 = vsel %vm378, %v377, 0
        %v380 = vshrl.u32 %v379, 5
        %v381 = vand.u32 %v379, 31
        %v382 = vsub.s32 32, %v381
        %v383 = vshrl.u32 683565275, %v382
        %v384 = vshll.u32 683565275, %v381
        %v385 = vshrl.u32 2475754826, %v382
        %v386 = vor.u32 %v384, %v385
        %v387 = vshll.u32 2475754826, %v381
        %v388 = vshrl.u32 2131351028, %v382
        %v389 = vor.u32 %v387, %v388
        %v390 = vshll.u32 2131351028, %v381
        %v391 = vshrl.u32 2102212464, %v382
        %v392 = vor.u32 %v390, %v391
        %v393 = vshll.u32 2102212464, %v381
        %v394 = vshrl.u32 920167782, %v382
        %v395 = vor.u32 %v393, %v394
        %v396 = vshll.u32 920167782, %v381
        %v397 = vshrl.u32 1326507024, %v382
        %v398 = vor.u32 %v396, %v397
        %vm399 = vcmp.lt.s32.totalorder %v380, 1
        %vm400 = vcmp.lt.s32.totalorder %v380, 2
        %vm401 = vcmp.lt.s32.totalorder %v380, 3
        %vm402 = vcmp.lt.s32.totalorder %v380, 4
        %v403 = vsel %vm399, %v383, %v386
        %v404 = vsel %vm402, %v392, 2102212464
        %v405 = vsel %vm401, %v389, %v404
        %v406 = vsel %vm400, %v403, %v405
        %v407 = vsel %vm399, %v386, %v389
        %v408 = vsel %vm402, %v395, 920167782
        %v409 = vsel %vm401, %v392, %v408
        %v410 = vsel %vm400, %v407, %v409
        %v411 = vsel %vm399, %v389, %v392
        %v412 = vsel %vm402, %v398, 1326507024
        %v413 = vsel %vm401, %v395, %v412
        %v414 = vsel %vm400, %v411, %v413
        %v415 = vshll.u32 %v375, 8
        %v416 = vand.u32 %v415, 65535
        %v417 = vshrl.u32 %v415, 16
        %v418 = vand.u32 %v414, 65535
        %v419 = vshrl.u32 %v414, 16
        %v420 = vmul.u32 %v416, %v418
        %v421 = vmul.u32 %v416, %v419
        %v422 = vmul.u32 %v417, %v418
        %v423 = vmul.u32 %v417, %v419
        %v424 = vshll.u32 %v421, 16
        %v425 = vshrl.u32 %v421, 16
        %v426 = vshll.u32 %v422, 16
        %v427 = vshrl.u32 %v422, 16
        %vm428 = vc.u32 %v420, %v424
        %v429 = vsel %vm428, 1, 0
        %v430 = vadd.s32 %v420, %v424
        %v431 = vadd.s32 %v423, %v429
        %vm432 = vc.u32 %v430, %v426
        %v433 = vsel %vm432, 1, 0
        %v434 = vadd.s32 %v430, %v426
        %v435 = vadd.s32 %v431, %v433
        %v436 = vadd.s32 %v435, %v425
        %v437 = vadd.s32 %v436, %v427
        %v438 = vand.u32 %v415, 65535
        %v439 = vshrl.u32 %v415, 16
        %v440 = vand.u32 %v410, 65535
        %v441 = vshrl.u32 %v410, 16
        %v442 = vmul.u32 %v438, %v440
        %v443 = vmul.u32 %v438, %v441
        %v444 = vmul.u32 %v439, %v440
        %v445 = vmul.u32 %v439, %v441
        %v446 = vshll.u32 %v443, 16
        %v447 = vshrl.u32 %v443, 16
        %v448 = vshll.u32 %v444, 16
        %v449 = vshrl.u32 %v444, 16
        %vm450 = vc.u32 %v442, %v446
        %v451 = vsel %vm450, 1, 0
        %v452 = vadd.s32 %v442, %v446
        %v453 = vadd.s32 %v445, %v451
        %vm454 = vc.u32 %v452, %v448
        %v455 = vsel %vm454, 1, 0
        %v456 = vadd.s32 %v452, %v448
        %v457 = vadd.s32 %v453, %v455
        %v458 = vadd.s32 %v457, %v447
        %v459 = vadd.s32 %v458, %v449
        %v460 = vmul.u32 %v415, %v406
        %v461 = vadd.s32 %v437, %v456
        %vm462 = vc.u32 %v437, %v456
        %v463 = vadd.s32 %v459, 1
        %v464 = vsel %vm462, %v463, %v459
        %v465 = vadd.s32 %v460, %v464
        %v466 = vadd.s32 %v465, 536870912
        %v467 = vshrl.u32 %v466, 30
        %v468 = vshll.u32 %v467, 30
        %v469 = vsub.s32 %v465, %v468
        %vm470 = vcmp.lt.s32.totalorder %v469, 0
        %v471 = vsub.s32 0, %v469
        %v472 = vsel %vm470, %v471, %v469
        %v473 = vclz %v472
        %v474 = vsub.s32 %v473, 2
        %vm475 = vcmp.gt.s32.totalorder 0, %v474
        %v476 = vsel %vm475, 0, %v474
        %v477 = vsub.s32 32, %v476
        %v478 = vshll.u32 %v469, %v476
        %v479 = vshrl.u32 %v461, %v477
        %v480 = vor.u32 %v478, %v479
        %v481 = vsub.s32 4294967266, %v476
        %v482 = vadd.s32 %v481, 127
        %v483 = vshll.u32 %v482, 23
        %v484 = vor.u32 4788187, %v483
        %v485 = vand.u32 2147483647, %v484
        %v487 = vcvt.s32.f32 %v480
        %v488 = vmul.f32 %v487, %v485
        %v489 = vxor.u32 %v488, 2147483648
        %v490 = vsel %vm369, %v489, %v488
        %v491 = vsub.s32 4, %v467
        %v492 = vsel %vm369, %v491, %v467
        %v493 = vsel %vm368, %v365, %v490
        %v494 = vsel %vm368, 0, %v492
        %v495 = vmul.f32 %v493, %v493
        %v496 = vmul.f32 %v495, -0.001358992
        %v497 = vadd.f32 %v496, 0.041655596
        %v498 = vmul.f32 %v495, %v497
        %v499 = vadd.f32 %v498, -0.4999988
        %v500 = vmul.f32 %v495, %v499
        %v501 = vadd.f32 1.0, %v500
        %v502 = vmul.f32 %v493, %v493
        %v503 = vmul.f32 %v502, -0.00019511016
        %v504 = vadd.f32 %v503, 0.008332121
        %v505 = vmul.f32 %v502, %v504
        %v506 = vadd.f32 %v505, -0.16666654
        %v507 = vmul.f32 %v502, %v506
        %v508 = vadd.f32 %v507, 1.0
        %v509 = vmul.f32 %v508, %v493
        %vm510 = vweird.f32 %v365
        %v511 = vadd.s32 %v494, 3
        %v512 = vand.u32 %v511, 3
        %vm513 = vcmp.lt.s32.totalorder %v512, 2
        %vm514 = vcmp.eq.s32.totalorder %v512, 0
        %v515 = vxor.u32 %v509, 2147483648
        %v516 = vsel %vm514, %v501, %v515
        %vm517 = vcmp.eq.s32.totalorder %v512, 2
        %v518 = vxor.u32 %v501, 2147483648
        %v519 = vsel %vm517, %v518, %v509
        %v520 = vsel %vm513, %v516, %v519
        %v521 = vsel %vm510, nan, %v520
        %v522 = vand.u32 2147483647, %v366
        %vm523 = vcmp.le.f32.partialorder %v522, 0.7853982
        %vm524 = vcmp.lt.s32.totalorder %v366, 0
        %v525 = vand.u32 %v366, 2139095040
        %v526 = vshrl.u32 %v525, 23
        %v527 = vsub.s32 %v526, 127
        %v528 = vand.u32 2147483647, %v366
        %v529 = vand.u32 %v528, 8388607
        %v530 = vor.u32 %v529, 8388608
        %v531 = vsub.s32 0, %v530
        %v532 = vadd.s32 %v527, 1
        %vm533 = vcmp.gt.s32.totalorder %v532, 0
        %v534 = vsel %vm533, %v532, 0
        %v535 = vshrl.u32 %v534, 5
        %v536 = vand.u32 %v534, 31
        %v537 = vsub.s32 32, %v536
        %v538 = vshrl.u32 683565275, %v537
        %v539 = vshll.u32 683565275, %v536
        %v540 = vshrl.u32 2475754826, %v537
        %v541 = vor.u32 %v539, %v540
        %v542 = vshll.u32 2475754826, %v536
        %v543 = vshrl.u32 2131351028, %v537
        %v544 = vor.u32 %v542, %v543
        %v545 = vshll.u32 2131351028, %v536
        %v546 = vshrl.u32 2102212464, %v537
        %v547 = vor.u32 %v545, %v546
        %v548 = vshll.u32 2102212464, %v536
        %v549 = vshrl.u32 920167782, %v537
        %v550 = vor.u32 %v548, %v549
        %v551 = vshll.u32 920167782, %v536
        %v552 = vshrl.u32 1326507024, %v537
        %v553 = vor.u32 %v551, %v552
        %vm554 = vcmp.lt.s32.totalorder %v535, 1
        %vm555 = vcmp.lt.s32.totalorder %v535, 2
        %vm556 = vcmp.lt.s32.totalorder %v535, 3
        %vm557 = vcmp.lt.s32.totalorder %v535, 4
        %v558 = vsel %vm554, %v538, %v541
        %v559 = vsel %vm557, %v547, 2102212464
        %v560 = vsel %vm556, %v544, %v559
        %v561 = vsel %vm555, %v558, %v560
        %v562 = vsel %vm554, %v541, %v544
        %v563 = vsel %vm557, %v550, 920167782
        %v564 = vsel %vm556, %v547, %v563
        %v565 = vsel %vm555, %v562, %v564
        %v566 = vsel %vm554, %v544, %v547
        %v567 = vsel %vm557, %v553, 1326507024
        %v568 = vsel %vm556, %v550, %v567
        %v569 = vsel %vm555, %v566, %v568
        %v570 = vshll.u32 %v530, 8
        %v571 = vand.u32 %v570, 65535
        %v572 = vshrl.u32 %v570, 16
        %v573 = vand.u32 %v569, 65535
        %v574 = vshrl.u32 %v569, 16
        %v575 = vmul.u32 %v571, %v573
        %v576 = vmul.u32 %v571, %v574
        %v577 = vmul.u32 %v572, %v573
        %v578 = vmul.u32 %v572, %v574
        %v579 = vshll.u32 %v576, 16
        %v580 = vshrl.u32 %v576, 16
        %v581 = vshll.u32 %v577, 16
        %v582 = vshrl.u32 %v577, 16
        %vm583 = vc.u32 %v575, %v579
        %v584 = vsel %vm583, 1, 0
        %v585 = vadd.s32 %v575, %v579
        %v586 = vadd.s32 %v578, %v584
        %vm587 = vc.u32 %v585, %v581
        %v588 = vsel %vm587, 1, 0
        %v589 = vadd.s32 %v585, %v581
        %v590 = vadd.s32 %v586, %v588
        %v591 = vadd.s32 %v590, %v580
        %v592 = vadd.s32 %v591, %v582
        %v593 = vand.u32 %v570, 65535
        %v594 = vshrl.u32 %v570, 16
        %v595 = vand.u32 %v565, 65535
        %v596 = vshrl.u32 %v565, 16
        %v597 = vmul.u32 %v593, %v595
        %v598 = vmul.u32 %v593, %v596
        %v599 = vmul.u32 %v594, %v595
        %v600 = vmul.u32 %v594, %v596
        %v601 = vshll.u32 %v598, 16
        %v602 = vshrl.u32 %v598, 16
        %v603 = vshll.u32 %v599, 16
        %v604 = vshrl.u32 %v599, 16
        %vm605 = vc.u32 %v597, %v601
        %v606 = vsel %vm605, 1, 0
        %v607 = vadd.s32 %v597, %v601
        %v608 = vadd.s32 %v600, %v606
        %vm609 = vc.u32 %v607, %v603
        %v610 = vsel %vm609, 1, 0
        %v611 = vadd.s32 %v607, %v603
        %v612 = vadd.s32 %v608, %v610
        %v613 = vadd.s32 %v612, %v602
        %v614 = vadd.s32 %v613, %v604
        %v615 = vmul.u32 %v570, %v561
        %v616 = vadd.s32 %v592, %v611
        %vm617 = vc.u32 %v592, %v611
        %v618 = vadd.s32 %v614, 1
        %v619 = vsel %vm617, %v618, %v614
        %v620 = vadd.s32 %v615, %v619
        %v621 = vadd.s32 %v620, 536870912
        %v622 = vshrl.u32 %v621, 30
        %v623 = vshll.u32 %v622, 30
        %v624 = vsub.s32 %v620, %v623
        %vm625 = vcmp.lt.s32.totalorder %v624, 0
        %v626 = vsub.s32 0, %v624
        %v627 = vsel %vm625, %v626, %v624
        %v628 = vclz %v627
        %v629 = vsub.s32 %v628, 2
        %vm630 = vcmp.gt.s32.totalorder 0, %v629
        %v631 = vsel %vm630, 0, %v629
        %v632 = vsub.s32 32, %v631
        %v633 = vshll.u32 %v624, %v631
        %v634 = vshrl.u32 %v616, %v632
        %v635 = vor.u32 %v633, %v634
        %v636 = vsub.s32 4294967266, %v631
        %v637 = vadd.s32 %v636, 127
        %v638 = vshll.u32 %v637, 23
        %v639 = vor.u32 4788187, %v638
        %v640 = vand.u32 2147483647, %v639
        %v642 = vcvt.s32.f32 %v635
        %v643 = vmul.f32 %v642, %v640
        %v644 = vxor.u32 %v643, 2147483648
        %v645 = vsel %vm524, %v644, %v643
        %v646 = vsub.s32 4, %v622
        %v647 = vsel %vm524, %v646, %v622
        %v648 = vsel %vm523, %v366, %v645
        %v649 = vsel %vm523, 0, %v647
        %v650 = vmul.f32 %v648, %v648
        %v651 = vmul.f32 %v650, -0.001358992
        %v652 = vadd.f32 %v651, 0.041655596
        %v653 = vmul.f32 %v650, %v652
        %v654 = vadd.f32 %v653, -0.4999988
        %v655 = vmul.f32 %v650, %v654
        %v656 = vadd.f32 1.0, %v655
        %v657 = vmul.f32 %v648, %v648
        %v658 = vmul.f32 %v657, -0.00019511016
        %v659 = vadd.f32 %v658, 0.008332121
        %v660 = vmul.f32 %v657, %v659
        %v661 = vadd.f32 %v660, -0.16666654
        %v662 = vmul.f32 %v657, %v661
        %v663 = vadd.f32 %v662, 1.0
        %v664 = vmul.f32 %v663, %v648
        %vm665 = vweird.f32 %v366
        %v666 = vadd.s32 %v649, 3
        %v667 = vand.u32 %v666, 3
        %vm668 = vcmp.lt.s32.totalorder %v667, 2
        %vm669 = vcmp.eq.s32.totalorder %v667, 0
        %v670 = vxor.u32 %v664, 2147483648
        %v671 = vsel %vm669, %v656, %v670
        %vm672 = vcmp.eq.s32.totalorder %v667, 2
        %v673 = vxor.u32 %v656, 2147483648
        %v674 = vsel %vm672, %v673, %v664
        %v675 = vsel %vm668, %v671, %v674
        %v676 = vsel %vm665, nan, %v675
        %v677 = vadd.f32 %v365, 1.5707964
        %v678 = vadd.f32 %v366, 1.5707964
        %v679 = vand.u32 2147483647, %v677
        %vm680 = vcmp.le.f32.partialorder %v679, 0.7853982
        %vm681 = vcmp.lt.s32.totalorder %v677, 0
        %v682 = vand.u32 %v677, 2139095040
        %v683 = vshrl.u32 %v682, 23
        %v684 = vsub.s32 %v683, 127
        %v685 = vand.u32 2147483647, %v677
        %v686 = vand.u32 %v685, 8388607
        %v687 = vor.u32 %v686, 8388608
        %v688 = vsub.s32 0, %v687
        %v689 = vadd.s32 %v684, 1
        %vm690 = vcmp.gt.s32.totalorder %v689, 0
        %v691 = vsel %vm690, %v689, 0
        %v692 = vshrl.u32 %v691, 5
        %v693 = vand.u32 %v691, 31
        %v694 = vsub.s32 32, %v693
        %v695 = vshrl.u32 683565275, %v694
        %v696 = vshll.u32 683565275, %v693
        %v697 = vshrl.u32 2475754826, %v694
        %v698 = vor.u32 %v696, %v697
        %v699 = vshll.u32 2475754826, %v693
        %v700 = vshrl.u32 2131351028, %v694
        %v701 = vor.u32 %v699, %v700
        %v702 = vshll.u32 2131351028, %v693
        %v703 = vshrl.u32 2102212464, %v694
        %v704 = vor.u32 %v702, %v703
        %v705 = vshll.u32 2102212464, %v693
        %v706 = vshrl.u32 920167782, %v694
        %v707 = vor.u32 %v705, %v706
        %v708 = vshll.u32 920167782, %v693
        %v709 = vshrl.u32 1326507024, %v694
        %v710 = vor.u32 %v708, %v709
        %vm711 = vcmp.lt.s32.totalorder %v692, 1
        %vm712 = vcmp.lt.s32.totalorder %v692, 2
        %vm713 = vcmp.lt.s32.totalorder %v692, 3
        %vm714 = vcmp.lt.s32.totalorder %v692, 4
        %v715 = vsel %vm711, %v695, %v698
        %v716 = vsel %vm714, %v704, 2102212464
        %v717 = vsel %vm713, %v701, %v716
        %v718 = vsel %vm712, %v715, %v717
        %v719 = vsel %vm711, %v698, %v701
        %v720 = vsel %vm714, %v707, 920167782
        %v721 = vsel %vm713, %v704, %v720
        %v722 = vsel %vm712, %v719, %v721
        %v723 = vsel %vm711, %v701, %v704
        %v724 = vsel %vm714, %v710, 1326507024
        %v725 = vsel %vm713, %v707, %v724
        %v726 = vsel %vm712, %v723, %v725
        %v727 = vshll.u32 %v687, 8
        %v728 = vand.u32 %v727, 65535
        %v729 = vshrl.u32 %v727, 16
        %v730 = vand.u32 %v726, 65535
        %v731 = vshrl.u32 %v726, 16
        %v732 = vmul.u32 %v728, %v730
        %v733 = vmul.u32 %v728, %v731
        %v734 = vmul.u32 %v729, %v730
        %v735 = vmul.u32 %v729, %v731
        %v736 = vshll.u32 %v733, 16
        %v737 = vshrl.u32 %v733, 16
        %v738 = vshll.u32 %v734, 16
        %v739 = vshrl.u32 %v734, 16
        %vm740 = vc.u32 %v732, %v736
        %v741 = vsel %vm740, 1, 0
        %v742 = vadd.s32 %v732, %v736
        %v743 = vadd.s32 %v735, %v741
        %vm744 = vc.u32 %v742, %v738
        %v745 = vsel %vm744, 1, 0
        %v746 = vadd.s32 %v742, %v738
        %v747 = vadd.s32 %v743, %v745
        %v748 = vadd.s32 %v747, %v737
        %v749 = vadd.s32 %v748, %v739
        %v750 = vand.u32 %v727, 65535
        %v751 = vshrl.u32 %v727, 16
        %v752 = vand.u32 %v722, 65535
        %v753 = vshrl.u32 %v722, 16
        %v754 = vmul.u32 %v750, %v752
        %v755 = vmul.u32 %v750, %v753
        %v756 = vmul.u32 %v751, %v752
        %v757 = vmul.u32 %v751, %v753
        %v758 = vshll.u32 %v755, 16
        %v759 = vshrl.u32 %v755, 16
        %v760 = vshll.u32 %v756, 16
        %v761 = vshrl.u32 %v756, 16
        %vm762 = vc.u32 %v754, %v758
        %v763 = vsel %vm762, 1, 0
        %v764 = vadd.s32 %v754, %v758
        %v765 = vadd.s32 %v757, %v763
        %vm766 = vc.u32 %v764, %v760
        %v767 = vsel %vm766, 1, 0
        %v768 = vadd.s32 %v764, %v760
        %v769 = vadd.s32 %v765, %v767
        %v770 = vadd.s32 %v769, %v759
        %v771 = vadd.s32 %v770, %v761
        %v772 = vmul.u32 %v727, %v718
        %v773 = vadd.s32 %v749, %v768
        %vm774 = vc.u32 %v749, %v768
        %v775 = vadd.s32 %v771, 1
        %v776 = vsel %vm774, %v775, %v771
        %v777 = vadd.s32 %v772, %v776
        %v778 = vadd.s32 %v777, 536870912
        %v779 = vshrl.u32 %v778, 30
        %v780 = vshll.u32 %v779, 30
        %v781 = vsub.s32 %v777, %v780
        %vm782 = vcmp.lt.s32.totalorder %v781, 0
        %v783 = vsub.s32 0, %v781
        %v784 = vsel %vm782, %v783, %v781
        %v785 = vclz %v784
        %v786 = vsub.s32 %v785, 2
        %vm787 = vcmp.gt.s32.totalorder 0, %v786
        %v788 = vsel %vm787, 0, %v786
        %v789 = vsub.s32 32, %v788
        %v790 = vshll.u32 %v781, %v788
        %v791 = vshrl.u32 %v773, %v789
        %v792 = vor.u32 %v790, %v791
        %v793 = vsub.s32 4294967266, %v788
        %v794 = vadd.s32 %v793, 127
        %v795 = vshll.u32 %v794, 23
        %v796 = vor.u32 4788187, %v795
        %v797 = vand.u32 2147483647, %v796
        %v799 = vcvt.s32.f32 %v792
        %v800 = vmul.f32 %v799, %v797
        %v801 = vxor.u32 %v800, 2147483648
        %v802 = vsel %vm681, %v801, %v800
        %v803 = vsub.s32 4, %v779
        %v804 = vsel %vm681, %v803, %v779
        %v805 = vsel %vm680, %v677, %v802
        %v806 = vsel %vm680, 0, %v804
        %v807 = vmul.f32 %v805, %v805
        %v808 = vmul.f32 %v807, -0.001358992
        %v809 = vadd.f32 %v808, 0.041655596
        %v810 = vmul.f32 %v807, %v809
        %v811 = vadd.f32 %v810, -0.4999988
        %v812 = vmul.f32 %v807, %v811
        %v813 = vadd.f32 1.0, %v812
        %v814 = vmul.f32 %v805, %v805
        %v815 = vmul.f32 %v814, -0.00019511016
        %v816 = vadd.f32 %v815, 0.008332121
        %v817 = vmul.f32 %v814, %v816
        %v818 = vadd.f32 %v817, -0.16666654
        %v819 = vmul.f32 %v814, %v818
        %v820 = vadd.f32 %v819, 1.0
        %v821 = vmul.f32 %v820, %v805
        %vm822 = vweird.f32 %v677
        %v823 = vadd.s32 %v806, 3
        %v824 = vand.u32 %v823, 3
        %vm825 = vcmp.lt.s32.totalorder %v824, 2
        %vm826 = vcmp.eq.s32.totalorder %v824, 0
        %v827 = vxor.u32 %v821, 2147483648
        %v828 = vsel %vm826, %v813, %v827
        %vm829 = vcmp.eq.s32.totalorder %v824, 2
        %v830 = vxor.u32 %v813, 2147483648
        %v831 = vsel %vm829, %v830, %v821
        %v832 = vsel %vm825, %v828, %v831
        %v833 = vsel %vm822, nan, %v832
        %v834 = vand.u32 2147483647, %v678
        %vm835 = vcmp.le.f32.partialorder %v834, 0.7853982
        %vm836 = vcmp.lt.s32.totalorder %v678, 0
        %v837 = vand.u32 %v678, 2139095040
        %v838 = vshrl.u32 %v837, 23
        %v839 = vsub.s32 %v838, 127
        %v840 = vand.u32 2147483647, %v678
        %v841 = vand.u32 %v840, 8388607
        %v842 = vor.u32 %v841, 8388608
        %v843 = vsub.s32 0, %v842
        %v844 = vadd.s32 %v839, 1
        %vm845 = vcmp.gt.s32.totalorder %v844, 0
        %v846 = vsel %vm845, %v844, 0
        %v847 = vshrl.u32 %v846, 5
        %v848 = vand.u32 %v846, 31
        %v849 = vsub.s32 32, %v848
        %v850 = vshrl.u32 683565275, %v849
        %v851 = vshll.u32 683565275, %v848
        %v852 = vshrl.u32 2475754826, %v849
        %v853 = vor.u32 %v851, %v852
        %v854 = vshll.u32 2475754826, %v848
        %v855 = vshrl.u32 2131351028, %v849
        %v856 = vor.u32 %v854, %v855
        %v857 = vshll.u32 2131351028, %v848
        %v858 = vshrl.u32 2102212464, %v849
        %v859 = vor.u32 %v857, %v858
        %v860 = vshll.u32 2102212464, %v848
        %v861 = vshrl.u32 920167782, %v849
        %v862 = vor.u32 %v860, %v861
        %v863 = vshll.u32 920167782, %v848
        %v864 = vshrl.u32 1326507024, %v849
        %v865 = vor.u32 %v863, %v864
        %vm866 = vcmp.lt.s32.totalorder %v847, 1
        %vm867 = vcmp.lt.s32.totalorder %v847, 2
        %vm868 = vcmp.lt.s32.totalorder %v847, 3
        %vm869 = vcmp.lt.s32.totalorder %v847, 4
        %v870 = vsel %vm866, %v850, %v853
        %v871 = vsel %vm869, %v859, 2102212464
        %v872 = vsel %vm868, %v856, %v871
        %v873 = vsel %vm867, %v870, %v872
        %v874 = vsel %vm866, %v853, %v856
        %v875 = vsel %vm869, %v862, 920167782
        %v876 = vsel %vm868, %v859, %v875
        %v877 = vsel %vm867, %v874, %v876
        %v878 = vsel %vm866, %v856, %v859
        %v879 = vsel %vm869, %v865, 1326507024
        %v880 = vsel %vm868, %v862, %v879
        %v881 = vsel %vm867, %v878, %v880
        %v882 = vshll.u32 %v842, 8
        %v883 = vand.u32 %v882, 65535
        %v884 = vshrl.u32 %v882, 16
        %v885 = vand.u32 %v881, 65535
        %v886 = vshrl.u32 %v881, 16
        %v887 = vmul.u32 %v883, %v885
        %v888 = vmul.u32 %v883, %v886
        %v889 = vmul.u32 %v884, %v885
        %v890 = vmul.u32 %v884, %v886
        %v891 = vshll.u32 %v888, 16
        %v892 = vshrl.u32 %v888, 16
        %v893 = vshll.u32 %v889, 16
        %v894 = vshrl.u32 %v889, 16
        %vm895 = vc.u32 %v887, %v891
        %v896 = vsel %vm895, 1, 0
        %v897 = vadd.s32 %v887, %v891
        %v898 = vadd.s32 %v890, %v896
        %vm899 = vc.u32 %v897, %v893
        %v900 = vsel %vm899, 1, 0
        %v901 = vadd.s32 %v897, %v893
        %v902 = vadd.s32 %v898, %v900
        %v903 = vadd.s32 %v902, %v892
        %v904 = vadd.s32 %v903, %v894
        %v905 = vand.u32 %v882, 65535
        %v906 = vshrl.u32 %v882, 16
        %v907 = vand.u32 %v877, 65535
        %v908 = vshrl.u32 %v877, 16
        %v909 = vmul.u32 %v905, %v907
        %v910 = vmul.u32 %v905, %v908
        %v911 = vmul.u32 %v906, %v907
        %v912 = vmul.u32 %v906, %v908
        %v913 = vshll.u32 %v910, 16
        %v914 = vshrl.u32 %v910, 16
        %v915 = vshll.u32 %v911, 16
        %v916 = vshrl.u32 %v911, 16
        %vm917 = vc.u32 %v909, %v913
        %v918 = vsel %vm917, 1, 0
        %v919 = vadd.s32 %v909, %v913
        %v920 = vadd.s32 %v912, %v918
        %vm921 = vc.u32 %v919, %v915
        %v922 = vsel %vm921, 1, 0
        %v923 = vadd.s32 %v919, %v915
        %v924 = vadd.s32 %v920, %v922
        %v925 = vadd.s32 %v924, %v914
        %v926 = vadd.s32 %v925, %v916
        %v927 = vmul.u32 %v882, %v873
        %v928 = vadd.s32 %v904, %v923
        %vm929 = vc.u32 %v904, %v923
        %v930 = vadd.s32 %v926, 1
        %v931 = vsel %vm929, %v930, %v926
        %v932 = vadd.s32 %v927, %v931
        %v933 = vadd.s32 %v932, 536870912
        %v934 = vshrl.u32 %v933, 30
        %v935 = vshll.u32 %v934, 30
        %v936 = vsub.s32 %v932, %v935
        %vm937 = vcmp.lt.s32.totalorder %v936, 0
        %v938 = vsub.s32 0, %v936
        %v939 = vsel %vm937, %v938, %v936
        %v940 = vclz %v939
        %v941 = vsub.s32 %v940, 2
        %vm942 = vcmp.gt.s32.totalorder 0, %v941
        %v943 = vsel %vm942, 0, %v941
        %v944 = vsub.s32 32, %v943
        %v945 = vshll.u32 %v936, %v943
        %v946 = vshrl.u32 %v928, %v944
        %v947 = vor.u32 %v945, %v946
        %v948 = vsub.s32 4294967266, %v943
        %v949 = vadd.s32 %v948, 127
        %v950 = vshll.u32 %v949, 23
        %v951 = vor.u32 4788187, %v950
        %v952 = vand.u32 2147483647, %v951
        %v954 = vcvt.s32.f32 %v947
        %v955 = vmul.f32 %v954, %v952
        %v956 = vxor.u32 %v955, 2147483648
        %v957 = vsel %vm836, %v956, %v955
        %v958 = vsub.s32 4, %v934
        %v959 = vsel %vm836, %v958, %v934
        %v960 = vsel %vm835, %v678, %v957
        %v961 = vsel %vm835, 0, %v959
        %v962 = vmul.f32 %v960, %v960
        %v963 = vmul.f32 %v962, -0.001358992
        %v964 = vadd.f32 %v963, 0.041655596
        %v965 = vmul.f32 %v962, %v964
        %v966 = vadd.f32 %v965, -0.4999988
        %v967 = vmul.f32 %v962, %v966
        %v968 = vadd.f32 1.0, %v967
        %v969 = vmul.f32 %v960, %v960
        %v970 = vmul.f32 %v969, -0.00019511016
        %v971 = vadd.f32 %v970, 0.008332121
        %v972 = vmul.f32 %v969, %v971
        %v973 = vadd.f32 %v972, -0.16666654
        %v974 = vmul.f32 %v969, %v973
        %v975 = vadd.f32 %v974, 1.0
        %v976 = vmul.f32 %v975, %v960
        %vm977 = vweird.f32 %v678
        %v978 = vadd.s32 %v961, 3
        %v979 = vand.u32 %v978, 3
        %vm980 = vcmp.lt.s32.totalorder %v979, 2
        %vm981 = vcmp.eq.s32.totalorder %v979, 0
        %v982 = vxor.u32 %v976, 2147483648
        %v983 = vsel %vm981, %v968, %v982
        %vm984 = vcmp.eq.s32.totalorder %v979, 2
        %v985 = vxor.u32 %v968, 2147483648
        %v986 = vsel %vm984, %v985, %v976
        %v987 = vsel %vm980, %v983, %v986
        %v988 = vsel %vm977, nan, %v987
        %v989 = vmul.f32 %v521, 2.0
        %v990 = vmul.f32 %v676, 2.0
        %v991 = vmul.f32 %v989, %v833
        %v992 = vmul.f32 %v990, %v988
        %v993 = vmul.f32 %v521, %v521
        %v994 = vmul.f32 %v676, %v676
        %v995 = vmul.f32 %v993, 2.0
        %v996 = vmul.f32 %v994, 2.0
        %v997 = vsub.f32 1.0, %v995
        %v998 = vsub.f32 1.0, %v996
        %v999 = vld [vmem:[%s1] sm:$0xff]
        %v1000 = vld [vmem:[%s1 + $0x8] sm:$0xff]
        %v1001 = vld [vmem:[%s1 + $0x10] sm:$0xff]
        %v1002 = vld [vmem:[%s1 + $0x18] sm:$0xff]
        %v1003 = vld [vmem:[%s2] sm:$0xff]
        %v1004 = vld [vmem:[%s2 + $0x8] sm:$0xff]
        %v1005 = vld [vmem:[%s2 + $0x10] sm:$0xff]
        %v1006 = vld [vmem:[%s2 + $0x18] sm:$0xff]
        %1009 = vst [vmem:[#allocation1] ss:$2 sm:$0xff] %v833
        %s1010 = scalar_lea.vmem [#allocation1], 16
        %1011 = vst [vmem:[%s1010] ss:$2 sm:$0xff] %v988
        %v1012 = vld.sshfl [vmem:[#allocation1] sm:$0xff pattern:$0x75316420]
        %v1013 = vld.sshfl [vmem:[#allocation1 + $0x8] sm:$0xff pattern:$0x75316420]
        %v1014 = vld.sshfl [vmem:[#allocation1 + $0x10] sm:$0xff pattern:$0x75316420]
        %v1015 = vld.sshfl [vmem:[#allocation1 + $0x18] sm:$0xff pattern:$0x75316420]
        %vm1016 = vcmask 31744
        %v1018 = vsel %vm1016, %v1003, 0
        %v1021 = vsel %vm1016, %v1004, 0
        %v1024 = vsel %vm1016, %v1005, 0
        %v1027 = vsel %vm1016, %v1006, 0
        %vm1029 = vcmask 1043456
        %v1030 = vsel %vm1029, %v1012, 0
        %v1032 = vsel %vm1029, %v1013, 0
        %v1034 = vsel %vm1029, %v1014, 0
        %v1036 = vsel %vm1029, %v1015, 0
        %1038 = vmatpush.msra.mxu0 0.0
        %1039 = vmatpush.msra.mxu0 0.0
        %1040 = vmatpush.msra.mxu0 0.0
        %1041 = vmatpush.msra.mxu0 0.0
        %1042 = vmatpush.msra.mxu0 0.0
        %1043 = vmatpush.msra.mxu0 0.0
        %1044 = vmatpush.msra.mxu0 0.0
        %1045 = vmatpush.msra.mxu0 0.0
        %1046 = vmatpush.msra.mxu0 0.0
        %1047 = vmatpush.msra.mxu0 0.0
        %1048 = vmatpush.msra.mxu0 0.0
        %1049 = vmatpush.msra.mxu0 0.0
        %1050 = vmatpush.msra.mxu0 0.0
        %1051 = vmatpush.msra.mxu0 0.0
        %1052 = vmatpush.msra.mxu0 0.0
        %1053 = vmatpush.msra.mxu0 %v1030
        %1054 = vmatmul.f32.gmra.mxu0 %v1018
        %v1055 = vpop.f32.mrf.mxu0
        %v1056 = vadd.f32 0.0, %v1055
        %1057 = vmatmul.f32.gmra.mxu0 %v1021
        %v1058 = vpop.f32.mrf.mxu0
        %v1059 = vadd.f32 0.0, %v1058
        %1060 = vmatmul.f32.gmra.mxu0 %v1024
        %v1061 = vpop.f32.mrf.mxu0
        %v1062 = vadd.f32 0.0, %v1061
        %1063 = vmatmul.f32.gmra.mxu0 %v1027
        %v1064 = vpop.f32.mrf.mxu0
        %v1065 = vadd.f32 0.0, %v1064
        %1066 = vdwg.mxu0
        %1067 = vmatpush.msra.mxu0 0.0
        %1068 = vmatpush.msra.mxu0 0.0
        %1069 = vmatpush.msra.mxu0 0.0
        %1070 = vmatpush.msra.mxu0 0.0
        %1071 = vmatpush.msra.mxu0 0.0
        %1072 = vmatpush.msra.mxu0 0.0
        %1073 = vmatpush.msra.mxu0 0.0
        %1074 = vmatpush.msra.mxu0 0.0
        %1075 = vmatpush.msra.mxu0 0.0
        %1076 = vmatpush.msra.mxu0 0.0
        %1077 = vmatpush.msra.mxu0 0.0
        %1078 = vmatpush.msra.mxu0 0.0
        %1079 = vmatpush.msra.mxu0 0.0
        %1080 = vmatpush.msra.mxu0 0.0
        %1081 = vmatpush.msra.mxu0 0.0
        %1082 = vmatpush.msra.mxu0 %v1032
        %1083 = vmatmul.f32.gmra.mxu0 %v1018
        %v1084 = vpop.f32.mrf.mxu0
        %v1085 = vadd.f32 0.0, %v1084
        %1086 = vmatmul.f32.gmra.mxu0 %v1021
        %v1087 = vpop.f32.mrf.mxu0
        %v1088 = vadd.f32 0.0, %v1087
        %1089 = vmatmul.f32.gmra.mxu0 %v1024
        %v1090 = vpop.f32.mrf.mxu0
        %v1091 = vadd.f32 0.0, %v1090
        %1092 = vmatmul.f32.gmra.mxu0 %v1027
        %v1093 = vpop.f32.mrf.mxu0
        %v1094 = vadd.f32 0.0, %v1093
        %1095 = vdwg.mxu0
        %1096 = vmatpush.msra.mxu0 0.0
        %1097 = vmatpush.msra.mxu0 0.0
        %1098 = vmatpush.msra.mxu0 0.0
        %1099 = vmatpush.msra.mxu0 0.0
        %1100 = vmatpush.msra.mxu0 0.0
        %1101 = vmatpush.msra.mxu0 0.0
        %1102 = vmatpush.msra.mxu0 0.0
        %1103 = vmatpush.msra.mxu0 0.0
        %1104 = vmatpush.msra.mxu0 0.0
        %1105 = vmatpush.msra.mxu0 0.0
        %1106 = vmatpush.msra.mxu0 0.0
        %1107 = vmatpush.msra.mxu0 0.0
        %1108 = vmatpush.msra.mxu0 0.0
        %1109 = vmatpush.msra.mxu0 0.0
        %1110 = vmatpush.msra.mxu0 0.0
        %1111 = vmatpush.msra.mxu0 %v1034
        %1112 = vmatmul.f32.gmra.mxu0 %v1018
        %v1113 = vpop.f32.mrf.mxu0
        %v1114 = vadd.f32 0.0, %v1113
        %1115 = vmatmul.f32.gmra.mxu0 %v1021
        %v1116 = vpop.f32.mrf.mxu0
        %v1117 = vadd.f32 0.0, %v1116
        %1118 = vmatmul.f32.gmra.mxu0 %v1024
        %v1119 = vpop.f32.mrf.mxu0
        %v1120 = vadd.f32 0.0, %v1119
        %1121 = vmatmul.f32.gmra.mxu0 %v1027
        %v1122 = vpop.f32.mrf.mxu0
        %v1123 = vadd.f32 0.0, %v1122
        %1124 = vdwg.mxu0
        %1125 = vmatpush.msra.mxu0 0.0
        %1126 = vmatpush.msra.mxu0 0.0
        %1127 = vmatpush.msra.mxu0 0.0
        %1128 = vmatpush.msra.mxu0 0.0
        %1129 = vmatpush.msra.mxu0 0.0
        %1130 = vmatpush.msra.mxu0 0.0
        %1131 = vmatpush.msra.mxu0 0.0
        %1132 = vmatpush.msra.mxu0 0.0
        %1133 = vmatpush.msra.mxu0 0.0
        %1134 = vmatpush.msra.mxu0 0.0
        %1135 = vmatpush.msra.mxu0 0.0
        %1136 = vmatpush.msra.mxu0 0.0
        %1137 = vmatpush.msra.mxu0 0.0
        %1138 = vmatpush.msra.mxu0 0.0
        %1139 = vmatpush.msra.mxu0 0.0
        %1140 = vmatpush.msra.mxu0 %v1036
        %1141 = vmatmul.f32.gmra.mxu0 %v1018
        %v1142 = vpop.f32.mrf.mxu0
        %v1143 = vadd.f32 0.0, %v1142
        %1144 = vmatmul.f32.gmra.mxu0 %v1021
        %v1145 = vpop.f32.mrf.mxu0
        %v1146 = vadd.f32 0.0, %v1145
        %1147 = vmatmul.f32.gmra.mxu0 %v1024
        %v1148 = vpop.f32.mrf.mxu0
        %v1149 = vadd.f32 0.0, %v1148
        %1150 = vmatmul.f32.gmra.mxu0 %v1027
        %v1151 = vpop.f32.mrf.mxu0
        %v1152 = vadd.f32 0.0, %v1151
        %1153 = vdwg.mxu0
        %1156 = vst [vmem:[#allocation1] ss:$2 sm:$0xff] %v521
        %s1157 = scalar_lea.vmem [#allocation1], 16
        %1158 = vst [vmem:[%s1157] ss:$2 sm:$0xff] %v676
        %v1159 = vld.sshfl [vmem:[#allocation1] sm:$0xff pattern:$0x75316420]
        %v1160 = vld.sshfl [vmem:[#allocation1 + $0x8] sm:$0xff pattern:$0x75316420]
        %v1161 = vld.sshfl [vmem:[#allocation1 + $0x10] sm:$0xff pattern:$0x75316420]
        %v1162 = vld.sshfl [vmem:[#allocation1 + $0x18] sm:$0xff pattern:$0x75316420]
        %v1164 = vsel %vm1016, %v999, 0
        %v1167 = vsel %vm1016, %v1000, 0
        %v1170 = vsel %vm1016, %v1001, 0
        %v1173 = vsel %vm1016, %v1002, 0
        %v1175 = vsel %vm1029, %v1159, 0
        %v1177 = vsel %vm1029, %v1160, 0
        %v1179 = vsel %vm1029, %v1161, 0
        %v1181 = vsel %vm1029, %v1162, 0
        %1183 = vmatpush.msra.mxu0 0.0
        %1184 = vmatpush.msra.mxu0 0.0
        %1185 = vmatpush.msra.mxu0 0.0
        %1186 = vmatpush.msra.mxu0 0.0
        %1187 = vmatpush.msra.mxu0 0.0
        %1188 = vmatpush.msra.mxu0 0.0
        %1189 = vmatpush.msra.mxu0 0.0
        %1190 = vmatpush.msra.mxu0 0.0
        %1191 = vmatpush.msra.mxu0 0.0
        %1192 = vmatpush.msra.mxu0 0.0
        %1193 = vmatpush.msra.mxu0 0.0
        %1194 = vmatpush.msra.mxu0 0.0
        %1195 = vmatpush.msra.mxu0 0.0
        %1196 = vmatpush.msra.mxu0 0.0
        %1197 = vmatpush.msra.mxu0 0.0
        %1198 = vmatpush.msra.mxu0 %v1175
        %1199 = vmatmul.f32.gmra.mxu0 %v1164
        %v1200 = vpop.f32.mrf.mxu0
        %v1201 = vadd.f32 %v1056, %v1200
        %1202 = vmatmul.f32.gmra.mxu0 %v1167
        %v1203 = vpop.f32.mrf.mxu0
        %v1204 = vadd.f32 %v1059, %v1203
        %1205 = vmatmul.f32.gmra.mxu0 %v1170
        %v1206 = vpop.f32.mrf.mxu0
        %v1207 = vadd.f32 %v1062, %v1206
        %1208 = vmatmul.f32.gmra.mxu0 %v1173
        %v1209 = vpop.f32.mrf.mxu0
        %v1210 = vadd.f32 %v1065, %v1209
        %1211 = vdwg.mxu0
        %1212 = vmatpush.msra.mxu0 0.0
        %1213 = vmatpush.msra.mxu0 0.0
        %1214 = vmatpush.msra.mxu0 0.0
        %1215 = vmatpush.msra.mxu0 0.0
        %1216 = vmatpush.msra.mxu0 0.0
        %1217 = vmatpush.msra.mxu0 0.0
        %1218 = vmatpush.msra.mxu0 0.0
        %1219 = vmatpush.msra.mxu0 0.0
        %1220 = vmatpush.msra.mxu0 0.0
        %1221 = vmatpush.msra.mxu0 0.0
        %1222 = vmatpush.msra.mxu0 0.0
        %1223 = vmatpush.msra.mxu0 0.0
        %1224 = vmatpush.msra.mxu0 0.0
        %1225 = vmatpush.msra.mxu0 0.0
        %1226 = vmatpush.msra.mxu0 0.0
        %1227 = vmatpush.msra.mxu0 %v1177
        %1228 = vmatmul.f32.gmra.mxu0 %v1164
        %v1229 = vpop.f32.mrf.mxu0
        %v1230 = vadd.f32 %v1085, %v1229
        %1231 = vmatmul.f32.gmra.mxu0 %v1167
        %v1232 = vpop.f32.mrf.mxu0
        %v1233 = vadd.f32 %v1088, %v1232
        %1234 = vmatmul.f32.gmra.mxu0 %v1170
        %v1235 = vpop.f32.mrf.mxu0
        %v1236 = vadd.f32 %v1091, %v1235
        %1237 = vmatmul.f32.gmra.mxu0 %v1173
        %v1238 = vpop.f32.mrf.mxu0
        %v1239 = vadd.f32 %v1094, %v1238
        %1240 = vdwg.mxu0
        %1241 = vmatpush.msra.mxu0 0.0
        %1242 = vmatpush.msra.mxu0 0.0
        %1243 = vmatpush.msra.mxu0 0.0
        %1244 = vmatpush.msra.mxu0 0.0
        %1245 = vmatpush.msra.mxu0 0.0
        %1246 = vmatpush.msra.mxu0 0.0
        %1247 = vmatpush.msra.mxu0 0.0
        %1248 = vmatpush.msra.mxu0 0.0
        %1249 = vmatpush.msra.mxu0 0.0
        %1250 = vmatpush.msra.mxu0 0.0
        %1251 = vmatpush.msra.mxu0 0.0
        %1252 = vmatpush.msra.mxu0 0.0
        %1253 = vmatpush.msra.mxu0 0.0
        %1254 = vmatpush.msra.mxu0 0.0
        %1255 = vmatpush.msra.mxu0 0.0
        %1256 = vmatpush.msra.mxu0 %v1179
        %1257 = vmatmul.f32.gmra.mxu0 %v1164
        %v1258 = vpop.f32.mrf.mxu0
        %v1259 = vadd.f32 %v1114, %v1258
        %1260 = vmatmul.f32.gmra.mxu0 %v1167
        %v1261 = vpop.f32.mrf.mxu0
        %v1262 = vadd.f32 %v1117, %v1261
        %1263 = vmatmul.f32.gmra.mxu0 %v1170
        %v1264 = vpop.f32.mrf.mxu0
        %v1265 = vadd.f32 %v1120, %v1264
        %1266 = vmatmul.f32.gmra.mxu0 %v1173
        %v1267 = vpop.f32.mrf.mxu0
        %v1268 = vadd.f32 %v1123, %v1267
        %1269 = vdwg.mxu0
        %1270 = vmatpush.msra.mxu0 0.0
        %1271 = vmatpush.msra.mxu0 0.0
        %1272 = vmatpush.msra.mxu0 0.0
        %1273 = vmatpush.msra.mxu0 0.0
        %1274 = vmatpush.msra.mxu0 0.0
        %1275 = vmatpush.msra.mxu0 0.0
        %1276 = vmatpush.msra.mxu0 0.0
        %1277 = vmatpush.msra.mxu0 0.0
        %1278 = vmatpush.msra.mxu0 0.0
        %1279 = vmatpush.msra.mxu0 0.0
        %1280 = vmatpush.msra.mxu0 0.0
        %1281 = vmatpush.msra.mxu0 0.0
        %1282 = vmatpush.msra.mxu0 0.0
        %1283 = vmatpush.msra.mxu0 0.0
        %1284 = vmatpush.msra.mxu0 0.0
        %1285 = vmatpush.msra.mxu0 %v1181
        %1286 = vmatmul.f32.gmra.mxu0 %v1164
        %v1287 = vpop.f32.mrf.mxu0
        %v1288 = vadd.f32 %v1143, %v1287
        %1289 = vmatmul.f32.gmra.mxu0 %v1167
        %v1290 = vpop.f32.mrf.mxu0
        %v1291 = vadd.f32 %v1146, %v1290
        %1292 = vmatmul.f32.gmra.mxu0 %v1170
        %v1293 = vpop.f32.mrf.mxu0
        %v1294 = vadd.f32 %v1149, %v1293
        %1295 = vmatmul.f32.gmra.mxu0 %v1173
        %v1296 = vpop.f32.mrf.mxu0
        %v1297 = vadd.f32 %v1152, %v1296
        %1298 = vdwg.mxu0
        %v1299 = vld [vmem:[%s3] sm:$0xff]
        %v1300 = vld [vmem:[%s3 + $0x8] sm:$0xff]
        %v1301 = vld [vmem:[%s3 + $0x10] sm:$0xff]
        %v1302 = vld [vmem:[%s3 + $0x18] sm:$0xff]
        %1305 = vst [vmem:[#allocation1] ss:$2 sm:$0xff] %v991
        %s1306 = scalar_lea.vmem [#allocation1], 16
        %1307 = vst [vmem:[%s1306] ss:$2 sm:$0xff] %v992
        %v1308 = vld.sshfl [vmem:[#allocation1] sm:$0xff pattern:$0x75316420]
        %v1309 = vld.sshfl [vmem:[#allocation1 + $0x8] sm:$0xff pattern:$0x75316420]
        %v1310 = vld.sshfl [vmem:[#allocation1 + $0x10] sm:$0xff pattern:$0x75316420]
        %v1311 = vld.sshfl [vmem:[#allocation1 + $0x18] sm:$0xff pattern:$0x75316420]
        %v1313 = vsel %vm1016, %v1299, 0
        %v1316 = vsel %vm1016, %v1300, 0
        %v1319 = vsel %vm1016, %v1301, 0
        %v1322 = vsel %vm1016, %v1302, 0
        %v1324 = vsel %vm1029, %v1308, 0
        %v1326 = vsel %vm1029, %v1309, 0
        %v1328 = vsel %vm1029, %v1310, 0
        %v1330 = vsel %vm1029, %v1311, 0
        %1332 = vmatpush.msra.mxu0 0.0
        %1333 = vmatpush.msra.mxu0 0.0
        %1334 = vmatpush.msra.mxu0 0.0
        %1335 = vmatpush.msra.mxu0 0.0
        %1336 = vmatpush.msra.mxu0 0.0
        %1337 = vmatpush.msra.mxu0 0.0
        %1338 = vmatpush.msra.mxu0 0.0
        %1339 = vmatpush.msra.mxu0 0.0
        %1340 = vmatpush.msra.mxu0 0.0
        %1341 = vmatpush.msra.mxu0 0.0
        %1342 = vmatpush.msra.mxu0 0.0
        %1343 = vmatpush.msra.mxu0 0.0
        %1344 = vmatpush.msra.mxu0 0.0
        %1345 = vmatpush.msra.mxu0 0.0
        %1346 = vmatpush.msra.mxu0 0.0
        %1347 = vmatpush.msra.mxu0 %v1324
        %1348 = vmatmul.f32.gmra.mxu0 %v1313
        %v1349 = vpop.f32.mrf.mxu0
        %v1350 = vadd.f32 0.0, %v1349
        %1351 = vmatmul.f32.gmra.mxu0 %v1316
        %v1352 = vpop.f32.mrf.mxu0
        %v1353 = vadd.f32 0.0, %v1352
        %1354 = vmatmul.f32.gmra.mxu0 %v1319
        %v1355 = vpop.f32.mrf.mxu0
        %v1356 = vadd.f32 0.0, %v1355
        %1357 = vmatmul.f32.gmra.mxu0 %v1322
        %v1358 = vpop.f32.mrf.mxu0
        %v1359 = vadd.f32 0.0, %v1358
        %1360 = vdwg.mxu0
        %1361 = vmatpush.msra.mxu0 0.0
        %1362 = vmatpush.msra.mxu0 0.0
        %1363 = vmatpush.msra.mxu0 0.0
        %1364 = vmatpush.msra.mxu0 0.0
        %1365 = vmatpush.msra.mxu0 0.0
        %1366 = vmatpush.msra.mxu0 0.0
        %1367 = vmatpush.msra.mxu0 0.0
        %1368 = vmatpush.msra.mxu0 0.0
        %1369 = vmatpush.msra.mxu0 0.0
        %1370 = vmatpush.msra.mxu0 0.0
        %1371 = vmatpush.msra.mxu0 0.0
        %1372 = vmatpush.msra.mxu0 0.0
        %1373 = vmatpush.msra.mxu0 0.0
        %1374 = vmatpush.msra.mxu0 0.0
        %1375 = vmatpush.msra.mxu0 0.0
        %1376 = vmatpush.msra.mxu0 %v1326
        %1377 = vmatmul.f32.gmra.mxu0 %v1313
        %v1378 = vpop.f32.mrf.mxu0
        %v1379 = vadd.f32 0.0, %v1378
        %1380 = vmatmul.f32.gmra.mxu0 %v1316
        %v1381 = vpop.f32.mrf.mxu0
        %v1382 = vadd.f32 0.0, %v1381
        %1383 = vmatmul.f32.gmra.mxu0 %v1319
        %v1384 = vpop.f32.mrf.mxu0
        %v1385 = vadd.f32 0.0, %v1384
        %1386 = vmatmul.f32.gmra.mxu0 %v1322
        %v1387 = vpop.f32.mrf.mxu0
        %v1388 = vadd.f32 0.0, %v1387
        %1389 = vdwg.mxu0
        %1390 = vmatpush.msra.mxu0 0.0
        %1391 = vmatpush.msra.mxu0 0.0
        %1392 = vmatpush.msra.mxu0 0.0
        %1393 = vmatpush.msra.mxu0 0.0
        %1394 = vmatpush.msra.mxu0 0.0
        %1395 = vmatpush.msra.mxu0 0.0
        %1396 = vmatpush.msra.mxu0 0.0
        %1397 = vmatpush.msra.mxu0 0.0
        %1398 = vmatpush.msra.mxu0 0.0
        %1399 = vmatpush.msra.mxu0 0.0
        %1400 = vmatpush.msra.mxu0 0.0
        %1401 = vmatpush.msra.mxu0 0.0
        %1402 = vmatpush.msra.mxu0 0.0
        %1403 = vmatpush.msra.mxu0 0.0
        %1404 = vmatpush.msra.mxu0 0.0
        %1405 = vmatpush.msra.mxu0 %v1328
        %1406 = vmatmul.f32.gmra.mxu0 %v1313
        %v1407 = vpop.f32.mrf.mxu0
        %v1408 = vadd.f32 0.0, %v1407
        %1409 = vmatmul.f32.gmra.mxu0 %v1316
        %v1410 = vpop.f32.mrf.mxu0
        %v1411 = vadd.f32 0.0, %v1410
        %1412 = vmatmul.f32.gmra.mxu0 %v1319
        %v1413 = vpop.f32.mrf.mxu0
        %v1414 = vadd.f32 0.0, %v1413
        %1415 = vmatmul.f32.gmra.mxu0 %v1322
        %v1416 = vpop.f32.mrf.mxu0
        %v1417 = vadd.f32 0.0, %v1416
        %1418 = vdwg.mxu0
        %1419 = vmatpush.msra.mxu0 0.0
        %1420 = vmatpush.msra.mxu0 0.0
        %1421 = vmatpush.msra.mxu0 0.0
        %1422 = vmatpush.msra.mxu0 0.0
        %1423 = vmatpush.msra.mxu0 0.0
        %1424 = vmatpush.msra.mxu0 0.0
        %1425 = vmatpush.msra.mxu0 0.0
        %1426 = vmatpush.msra.mxu0 0.0
        %1427 = vmatpush.msra.mxu0 0.0
        %1428 = vmatpush.msra.mxu0 0.0
        %1429 = vmatpush.msra.mxu0 0.0
        %1430 = vmatpush.msra.mxu0 0.0
        %1431 = vmatpush.msra.mxu0 0.0
        %1432 = vmatpush.msra.mxu0 0.0
        %1433 = vmatpush.msra.mxu0 0.0
        %1434 = vmatpush.msra.mxu0 %v1330
        %1435 = vmatmul.f32.gmra.mxu0 %v1313
        %v1436 = vpop.f32.mrf.mxu0
        %v1437 = vadd.f32 0.0, %v1436
        %1438 = vmatmul.f32.gmra.mxu0 %v1316
        %v1439 = vpop.f32.mrf.mxu0
        %v1440 = vadd.f32 0.0, %v1439
        %1441 = vmatmul.f32.gmra.mxu0 %v1319
        %v1442 = vpop.f32.mrf.mxu0
        %v1443 = vadd.f32 0.0, %v1442
        %1444 = vmatmul.f32.gmra.mxu0 %v1322
        %v1445 = vpop.f32.mrf.mxu0
        %v1446 = vadd.f32 0.0, %v1445
        %1447 = vdwg.mxu0
        %v1448 = vadd.f32 %v1201, %v1350
        %v1449 = vadd.f32 %v1230, %v1379
        %v1450 = vadd.f32 %v1259, %v1408
        %v1451 = vadd.f32 %v1288, %v1437
        %v1452 = vadd.f32 %v1204, %v1353
        %v1453 = vadd.f32 %v1233, %v1382
        %v1454 = vadd.f32 %v1262, %v1411
        %v1455 = vadd.f32 %v1291, %v1440
        %v1456 = vadd.f32 %v1207, %v1356
        %v1457 = vadd.f32 %v1236, %v1385
        %v1458 = vadd.f32 %v1265, %v1414
        %v1459 = vadd.f32 %v1294, %v1443
        %v1460 = vadd.f32 %v1210, %v1359
        %v1461 = vadd.f32 %v1239, %v1388
        %v1462 = vadd.f32 %v1268, %v1417
        %v1463 = vadd.f32 %v1297, %v1446
        %v1464 = vld [vmem:[%s4] sm:$0xff]
        %v1465 = vld [vmem:[%s4 + $0x8] sm:$0xff]
        %v1466 = vld [vmem:[%s4 + $0x10] sm:$0xff]
        %v1467 = vld [vmem:[%s4 + $0x18] sm:$0xff]
        %1470 = vst [vmem:[#allocation1] ss:$2 sm:$0xff] %v997
        %s1471 = scalar_lea.vmem [#allocation1], 16
        %1472 = vst [vmem:[%s1471] ss:$2 sm:$0xff] %v998
        %v1473 = vld.sshfl [vmem:[#allocation1] sm:$0xff pattern:$0x75316420]
        %v1474 = vld.sshfl [vmem:[#allocation1 + $0x8] sm:$0xff pattern:$0x75316420]
        %v1475 = vld.sshfl [vmem:[#allocation1 + $0x10] sm:$0xff pattern:$0x75316420]
        %v1476 = vld.sshfl [vmem:[#allocation1 + $0x18] sm:$0xff pattern:$0x75316420]
        %v1478 = vsel %vm1016, %v1464, 0
        %v1481 = vsel %vm1016, %v1465, 0
        %v1484 = vsel %vm1016, %v1466, 0
        %v1487 = vsel %vm1016, %v1467, 0
        %v1489 = vsel %vm1029, %v1473, 0
        %v1491 = vsel %vm1029, %v1474, 0
        %v1493 = vsel %vm1029, %v1475, 0
        %v1495 = vsel %vm1029, %v1476, 0
        %1497 = vmatpush.msra.mxu0 0.0
        %1498 = vmatpush.msra.mxu0 0.0
        %1499 = vmatpush.msra.mxu0 0.0
        %1500 = vmatpush.msra.mxu0 0.0
        %1501 = vmatpush.msra.mxu0 0.0
        %1502 = vmatpush.msra.mxu0 0.0
        %1503 = vmatpush.msra.mxu0 0.0
        %1504 = vmatpush.msra.mxu0 0.0
        %1505 = vmatpush.msra.mxu0 0.0
        %1506 = vmatpush.msra.mxu0 0.0
        %1507 = vmatpush.msra.mxu0 0.0
        %1508 = vmatpush.msra.mxu0 0.0
        %1509 = vmatpush.msra.mxu0 0.0
        %1510 = vmatpush.msra.mxu0 0.0
        %1511 = vmatpush.msra.mxu0 0.0
        %1512 = vmatpush.msra.mxu0 %v1489
        %1513 = vmatmul.f32.gmra.mxu0 %v1478
        %v1514 = vpop.f32.mrf.mxu0
        %v1515 = vadd.f32 0.0, %v1514
        %1516 = vmatmul.f32.gmra.mxu0 %v1481
        %v1517 = vpop.f32.mrf.mxu0
        %v1518 = vadd.f32 0.0, %v1517
        %1519 = vmatmul.f32.gmra.mxu0 %v1484
        %v1520 = vpop.f32.mrf.mxu0
        %v1521 = vadd.f32 0.0, %v1520
        %1522 = vmatmul.f32.gmra.mxu0 %v1487
        %v1523 = vpop.f32.mrf.mxu0
        %v1524 = vadd.f32 0.0, %v1523
        %1525 = vdwg.mxu0
        %1526 = vmatpush.msra.mxu0 0.0
        %1527 = vmatpush.msra.mxu0 0.0
        %1528 = vmatpush.msra.mxu0 0.0
        %1529 = vmatpush.msra.mxu0 0.0
        %1530 = vmatpush.msra.mxu0 0.0
        %1531 = vmatpush.msra.mxu0 0.0
        %1532 = vmatpush.msra.mxu0 0.0
        %1533 = vmatpush.msra.mxu0 0.0
        %1534 = vmatpush.msra.mxu0 0.0
        %1535 = vmatpush.msra.mxu0 0.0
        %1536 = vmatpush.msra.mxu0 0.0
        %1537 = vmatpush.msra.mxu0 0.0
        %1538 = vmatpush.msra.mxu0 0.0
        %1539 = vmatpush.msra.mxu0 0.0
        %1540 = vmatpush.msra.mxu0 0.0
        %1541 = vmatpush.msra.mxu0 %v1491
        %1542 = vmatmul.f32.gmra.mxu0 %v1478
        %v1543 = vpop.f32.mrf.mxu0
        %v1544 = vadd.f32 0.0, %v1543
        %1545 = vmatmul.f32.gmra.mxu0 %v1481
        %v1546 = vpop.f32.mrf.mxu0
        %v1547 = vadd.f32 0.0, %v1546
        %1548 = vmatmul.f32.gmra.mxu0 %v1484
        %v1549 = vpop.f32.mrf.mxu0
        %v1550 = vadd.f32 0.0, %v1549
        %1551 = vmatmul.f32.gmra.mxu0 %v1487
        %v1552 = vpop.f32.mrf.mxu0
        %v1553 = vadd.f32 0.0, %v1552
        %1554 = vdwg.mxu0
        %1555 = vmatpush.msra.mxu0 0.0
        %1556 = vmatpush.msra.mxu0 0.0
        %1557 = vmatpush.msra.mxu0 0.0
        %1558 = vmatpush.msra.mxu0 0.0
        %1559 = vmatpush.msra.mxu0 0.0
        %1560 = vmatpush.msra.mxu0 0.0
        %1561 = vmatpush.msra.mxu0 0.0
        %1562 = vmatpush.msra.mxu0 0.0
        %1563 = vmatpush.msra.mxu0 0.0
        %1564 = vmatpush.msra.mxu0 0.0
        %1565 = vmatpush.msra.mxu0 0.0
        %1566 = vmatpush.msra.mxu0 0.0
        %1567 = vmatpush.msra.mxu0 0.0
        %1568 = vmatpush.msra.mxu0 0.0
        %1569 = vmatpush.msra.mxu0 0.0
        %1570 = vmatpush.msra.mxu0 %v1493
        %1571 = vmatmul.f32.gmra.mxu0 %v1478
        %v1572 = vpop.f32.mrf.mxu0
        %v1573 = vadd.f32 0.0, %v1572
        %1574 = vmatmul.f32.gmra.mxu0 %v1481
        %v1575 = vpop.f32.mrf.mxu0
        %v1576 = vadd.f32 0.0, %v1575
        %1577 = vmatmul.f32.gmra.mxu0 %v1484
        %v1578 = vpop.f32.mrf.mxu0
        %v1579 = vadd.f32 0.0, %v1578
        %1580 = vmatmul.f32.gmra.mxu0 %v1487
        %v1581 = vpop.f32.mrf.mxu0
        %v1582 = vadd.f32 0.0, %v1581
        %1583 = vdwg.mxu0
        %1584 = vmatpush.msra.mxu0 0.0
        %1585 = vmatpush.msra.mxu0 0.0
        %1586 = vmatpush.msra.mxu0 0.0
        %1587 = vmatpush.msra.mxu0 0.0
        %1588 = vmatpush.msra.mxu0 0.0
        %1589 = vmatpush.msra.mxu0 0.0
        %1590 = vmatpush.msra.mxu0 0.0
        %1591 = vmatpush.msra.mxu0 0.0
        %1592 = vmatpush.msra.mxu0 0.0
        %1593 = vmatpush.msra.mxu0 0.0
        %1594 = vmatpush.msra.mxu0 0.0
        %1595 = vmatpush.msra.mxu0 0.0
        %1596 = vmatpush.msra.mxu0 0.0
        %1597 = vmatpush.msra.mxu0 0.0
        %1598 = vmatpush.msra.mxu0 0.0
        %1599 = vmatpush.msra.mxu0 %v1495
        %1600 = vmatmul.f32.gmra.mxu0 %v1478
        %v1601 = vpop.f32.mrf.mxu0
        %v1602 = vadd.f32 0.0, %v1601
        %1603 = vmatmul.f32.gmra.mxu0 %v1481
        %v1604 = vpop.f32.mrf.mxu0
        %v1605 = vadd.f32 0.0, %v1604
        %1606 = vmatmul.f32.gmra.mxu0 %v1484
        %v1607 = vpop.f32.mrf.mxu0
        %v1608 = vadd.f32 0.0, %v1607
        %1609 = vmatmul.f32.gmra.mxu0 %v1487
        %v1610 = vpop.f32.mrf.mxu0
        %v1611 = vadd.f32 0.0, %v1610
        %1612 = vdwg.mxu0
        %v1613 = vadd.f32 %v1448, %v1515
        %v1614 = vadd.f32 %v1449, %v1544
        %v1615 = vadd.f32 %v1450, %v1573
        %v1616 = vadd.f32 %v1451, %v1602
        %v1617 = vadd.f32 %v1452, %v1518
        %v1618 = vadd.f32 %v1453, %v1547
        %v1619 = vadd.f32 %v1454, %v1576
        %v1620 = vadd.f32 %v1455, %v1605
        %v1621 = vadd.f32 %v1456, %v1521
        %v1622 = vadd.f32 %v1457, %v1550
        %v1623 = vadd.f32 %v1458, %v1579
        %v1624 = vadd.f32 %v1459, %v1608
        %v1625 = vadd.f32 %v1460, %v1524
        %v1626 = vadd.f32 %v1461, %v1553
        %v1627 = vadd.f32 %v1462, %v1582
        %v1628 = vadd.f32 %v1463, %v1611
        %v1629 = vld [vmem:[%s5] sm:$0xff]
        %v1630 = vld [vmem:[%s5 + $0x8] sm:$0xff]
        %v1631 = vld [vmem:[%s5 + $0x10] sm:$0xff]
        %v1632 = vld [vmem:[%s5 + $0x18] sm:$0xff]
        %1634 = vset.pattern.permute.xlu0 0
        %1635 = vperm.xlu0 %1634, %v1629
        %v1636 = vpop.permute.xlu0 %1635
        %1639 = vset.pattern.permute.xlu0 0
        %1640 = vperm.xlu0 %1639, %v1630
        %v1641 = vpop.permute.xlu0 %1640
        %1644 = vset.pattern.permute.xlu0 0
        %1645 = vperm.xlu0 %1644, %v1631
        %v1646 = vpop.permute.xlu0 %1645
        %1649 = vset.pattern.permute.xlu0 0
        %1650 = vperm.xlu0 %1649, %v1632
        %v1651 = vpop.permute.xlu0 %1650
        %v1653 = vadd.f32 %v1613, %v1636
        %v1654 = vadd.f32 %v1614, %v1636
        %v1655 = vadd.f32 %v1615, %v1636
        %v1656 = vadd.f32 %v1616, %v1636
        %v1657 = vadd.f32 %v1617, %v1641
        %v1658 = vadd.f32 %v1618, %v1641
        %v1659 = vadd.f32 %v1619, %v1641
        %v1660 = vadd.f32 %v1620, %v1641
        %v1661 = vadd.f32 %v1621, %v1646
        %v1662 = vadd.f32 %v1622, %v1646
        %v1663 = vadd.f32 %v1623, %v1646
        %v1664 = vadd.f32 %v1624, %v1646
        %v1665 = vadd.f32 %v1625, %v1651
        %v1666 = vadd.f32 %v1626, %v1651
        %v1667 = vadd.f32 %v1627, %v1651
        %v1668 = vadd.f32 %v1628, %v1651
        %v1669 = vmax.f32 %v1653, 0.0
        %v1670 = vmax.f32 %v1654, 0.0
        %v1671 = vmax.f32 %v1655, 0.0
        %v1672 = vmax.f32 %v1656, 0.0
        %v1673 = vmax.f32 %v1657, 0.0
        %v1674 = vmax.f32 %v1658, 0.0
        %v1675 = vmax.f32 %v1659, 0.0
        %v1676 = vmax.f32 %v1660, 0.0
        %v1677 = vmax.f32 %v1661, 0.0
        %v1678 = vmax.f32 %v1662, 0.0
        %v1679 = vmax.f32 %v1663, 0.0
        %v1680 = vmax.f32 %v1664, 0.0
        %v1681 = vmax.f32 %v1665, 0.0
        %v1682 = vmax.f32 %v1666, 0.0
        %v1683 = vmax.f32 %v1667, 0.0
        %v1684 = vmax.f32 %v1668, 0.0
        %v1685 = vld [vmem:[%s6] sm:$0xff]
        %v1686 = vld [vmem:[%s6 + $0x8] sm:$0xff]
        %v1687 = vld [vmem:[%s6 + $0x10] sm:$0xff]
        %v1688 = vld [vmem:[%s6 + $0x18] sm:$0xff]
        %v1689 = vld [vmem:[%s7] sm:$0xff]
        %v1690 = vld [vmem:[%s7 + $0x8] sm:$0xff]
        %v1691 = vld [vmem:[%s7 + $0x10] sm:$0xff]
        %v1692 = vld [vmem:[%s7 + $0x18] sm:$0xff]
        %1694 = vset.pattern.permute.xlu0 0
        %1695 = vperm.xlu0 %1694, %v1689
        %v1696 = vpop.permute.xlu0 %1695
        %1699 = vset.pattern.permute.xlu0 0
        %1700 = vperm.xlu0 %1699, %v1690
        %v1701 = vpop.permute.xlu0 %1700
        %1704 = vset.pattern.permute.xlu0 0
        %1705 = vperm.xlu0 %1704, %v1691
        %v1706 = vpop.permute.xlu0 %1705
        %1709 = vset.pattern.permute.xlu0 0
        %1710 = vperm.xlu0 %1709, %v1692
        %v1711 = vpop.permute.xlu0 %1710
        %vm1713 = vcmask 261120
        %v1715 = vsel %vm1713, %v1685, 0
        %v1718 = vsel %vm1713, %v1686, 0
        %v1721 = vsel %vm1713, %v1687, 0
        %v1724 = vsel %vm1713, %v1688, 0
        %1726 = vmatpush.msra.mxu0 0.0
        %1727 = vmatpush.msra.mxu0 0.0
        %1728 = vmatpush.msra.mxu0 0.0
        %1729 = vmatpush.msra.mxu0 0.0
        %1730 = vmatpush.msra.mxu0 0.0
        %1731 = vmatpush.msra.mxu0 0.0
        %1732 = vmatpush.msra.mxu0 0.0
        %1733 = vmatpush.msra.mxu0 0.0
        %1734 = vmatpush.msra.mxu0 0.0
        %1735 = vmatpush.msra.mxu0 0.0
        %1736 = vmatpush.msra.mxu0 0.0
        %1737 = vmatpush.msra.mxu0 0.0
        %1738 = vmatpush.msra.mxu0 %v1681
        %1739 = vmatpush.msra.mxu0 %v1677
        %1740 = vmatpush.msra.mxu0 %v1673
        %1741 = vmatpush.msra.mxu0 %v1669
        %1742 = vmatmul.f32.gmra.mxu0 %v1715
        %v1743 = vpop.f32.mrf.mxu0
        %v1744 = vadd.f32 %v1696, %v1743
        %1745 = vmatmul.f32.gmra.mxu0 %v1718
        %v1746 = vpop.f32.mrf.mxu0
        %v1747 = vadd.f32 %v1701, %v1746
        %1748 = vmatmul.f32.gmra.mxu0 %v1721
        %v1749 = vpop.f32.mrf.mxu0
        %v1750 = vadd.f32 %v1706, %v1749
        %1751 = vmatmul.f32.gmra.mxu0 %v1724
        %v1752 = vpop.f32.mrf.mxu0
        %v1753 = vadd.f32 %v1711, %v1752
        %1754 = vdwg.mxu0
        %1755 = vmatpush.msra.mxu0 0.0
        %1756 = vmatpush.msra.mxu0 0.0
        %1757 = vmatpush.msra.mxu0 0.0
        %1758 = vmatpush.msra.mxu0 0.0
        %1759 = vmatpush.msra.mxu0 0.0
        %1760 = vmatpush.msra.mxu0 0.0
        %1761 = vmatpush.msra.mxu0 0.0
        %1762 = vmatpush.msra.mxu0 0.0
        %1763 = vmatpush.msra.mxu0 0.0
        %1764 = vmatpush.msra.mxu0 0.0
        %1765 = vmatpush.msra.mxu0 0.0
        %1766 = vmatpush.msra.mxu0 0.0
        %1767 = vmatpush.msra.mxu0 %v1682
        %1768 = vmatpush.msra.mxu0 %v1678
        %1769 = vmatpush.msra.mxu0 %v1674
        %1770 = vmatpush.msra.mxu0 %v1670
        %1771 = vmatmul.f32.gmra.mxu0 %v1715
        %v1772 = vpop.f32.mrf.mxu0
        %v1773 = vadd.f32 %v1696, %v1772
        %1774 = vmatmul.f32.gmra.mxu0 %v1718
        %v1775 = vpop.f32.mrf.mxu0
        %v1776 = vadd.f32 %v1701, %v1775
        %1777 = vmatmul.f32.gmra.mxu0 %v1721
        %v1778 = vpop.f32.mrf.mxu0
        %v1779 = vadd.f32 %v1706, %v1778
        %1780 = vmatmul.f32.gmra.mxu0 %v1724
        %v1781 = vpop.f32.mrf.mxu0
        %v1782 = vadd.f32 %v1711, %v1781
        %1783 = vdwg.mxu0
        %1784 = vmatpush.msra.mxu0 0.0
        %1785 = vmatpush.msra.mxu0 0.0
        %1786 = vmatpush.msra.mxu0 0.0
        %1787 = vmatpush.msra.mxu0 0.0
        %1788 = vmatpush.msra.mxu0 0.0
        %1789 = vmatpush.msra.mxu0 0.0
        %1790 = vmatpush.msra.mxu0 0.0
        %1791 = vmatpush.msra.mxu0 0.0
        %1792 = vmatpush.msra.mxu0 0.0
        %1793 = vmatpush.msra.mxu0 0.0
        %1794 = vmatpush.msra.mxu0 0.0
        %1795 = vmatpush.msra.mxu0 0.0
        %1796 = vmatpush.msra.mxu0 %v1683
        %1797 = vmatpush.msra.mxu0 %v1679
        %1798 = vmatpush.msra.mxu0 %v1675
        %1799 = vmatpush.msra.mxu0 %v1671
        %1800 = vmatmul.f32.gmra.mxu0 %v1715
        %v1801 = vpop.f32.mrf.mxu0
        %v1802 = vadd.f32 %v1696, %v1801
        %1803 = vmatmul.f32.gmra.mxu0 %v1718
        %v1804 = vpop.f32.mrf.mxu0
        %v1805 = vadd.f32 %v1701, %v1804
        %1806 = vmatmul.f32.gmra.mxu0 %v1721
        %v1807 = vpop.f32.mrf.mxu0
        %v1808 = vadd.f32 %v1706, %v1807
        %1809 = vmatmul.f32.gmra.mxu0 %v1724
        %v1810 = vpop.f32.mrf.mxu0
        %v1811 = vadd.f32 %v1711, %v1810
        %1812 = vdwg.mxu0
        %1813 = vmatpush.msra.mxu0 0.0
        %1814 = vmatpush.msra.mxu0 0.0
        %1815 = vmatpush.msra.mxu0 0.0
        %1816 = vmatpush.msra.mxu0 0.0
        %1817 = vmatpush.msra.mxu0 0.0
        %1818 = vmatpush.msra.mxu0 0.0
        %1819 = vmatpush.msra.mxu0 0.0
        %1820 = vmatpush.msra.mxu0 0.0
        %1821 = vmatpush.msra.mxu0 0.0
        %1822 = vmatpush.msra.mxu0 0.0
        %1823 = vmatpush.msra.mxu0 0.0
        %1824 = vmatpush.msra.mxu0 0.0
        %1825 = vmatpush.msra.mxu0 %v1684
        %1826 = vmatpush.msra.mxu0 %v1680
        %1827 = vmatpush.msra.mxu0 %v1676
        %1828 = vmatpush.msra.mxu0 %v1672
        %1829 = vmatmul.f32.gmra.mxu0 %v1715
        %v1830 = vpop.f32.mrf.mxu0
        %v1831 = vadd.f32 %v1696, %v1830
        %1832 = vmatmul.f32.gmra.mxu0 %v1718
        %v1833 = vpop.f32.mrf.mxu0
        %v1834 = vadd.f32 %v1701, %v1833
        %1835 = vmatmul.f32.gmra.mxu0 %v1721
        %v1836 = vpop.f32.mrf.mxu0
        %v1837 = vadd.f32 %v1706, %v1836
        %1838 = vmatmul.f32.gmra.mxu0 %v1724
        %v1839 = vpop.f32.mrf.mxu0
        %v1840 = vadd.f32 %v1711, %v1839
        %1841 = vdwg.mxu0
        %v1842 = vmax.f32 %v1744, 0.0
        %v1843 = vmax.f32 %v1773, 0.0
        %v1844 = vmax.f32 %v1802, 0.0
        %v1845 = vmax.f32 %v1831, 0.0
        %v1846 = vmax.f32 %v1747, 0.0
        %v1847 = vmax.f32 %v1776, 0.0
        %v1848 = vmax.f32 %v1805, 0.0
        %v1849 = vmax.f32 %v1834, 0.0
        %v1850 = vmax.f32 %v1750, 0.0
        %v1851 = vmax.f32 %v1779, 0.0
        %v1852 = vmax.f32 %v1808, 0.0
        %v1853 = vmax.f32 %v1837, 0.0
        %v1854 = vmax.f32 %v1753, 0.0
        %v1855 = vmax.f32 %v1782, 0.0
        %v1856 = vmax.f32 %v1811, 0.0
        %v1857 = vmax.f32 %v1840, 0.0
        %v1858 = vld [vmem:[%s8] sm:$0xff]
        %v1859 = vld [vmem:[%s8 + $0x8] sm:$0xff]
        %v1860 = vld [vmem:[%s8 + $0x10] sm:$0xff]
        %v1861 = vld [vmem:[%s8 + $0x18] sm:$0xff]
        %1863 = vset.pattern.permute.xlu0 0
        %1864 = vperm.xlu0 %1863, %v1858
        %v1865 = vpop.permute.xlu0 %1864
        %1868 = vset.pattern.permute.xlu0 0
        %1869 = vperm.xlu0 %1868, %v1859
        %v1870 = vpop.permute.xlu0 %1869
        %1873 = vset.pattern.permute.xlu0 0
        %1874 = vperm.xlu0 %1873, %v1860
        %v1875 = vpop.permute.xlu0 %1874
        %1878 = vset.pattern.permute.xlu0 0
        %1879 = vperm.xlu0 %1878, %v1861
        %v1880 = vpop.permute.xlu0 %1879
        %v1882 = vmul.f32 %v1842, %v1865
        %v1883 = vmul.f32 %v1843, %v1865
        %v1884 = vmul.f32 %v1844, %v1865
        %v1885 = vmul.f32 %v1845, %v1865
        %v1886 = vmul.f32 %v1846, %v1870
        %v1887 = vmul.f32 %v1847, %v1870
        %v1888 = vmul.f32 %v1848, %v1870
        %v1889 = vmul.f32 %v1849, %v1870
        %v1890 = vmul.f32 %v1850, %v1875
        %v1891 = vmul.f32 %v1851, %v1875
        %v1892 = vmul.f32 %v1852, %v1875
        %v1893 = vmul.f32 %v1853, %v1875
        %v1894 = vmul.f32 %v1854, %v1880
        %v1895 = vmul.f32 %v1855, %v1880
        %v1896 = vmul.f32 %v1856, %v1880
        %v1897 = vmul.f32 %v1857, %v1880
        %v1898 = vadd.f32 %v1882, %v1886
        %v1899 = vadd.f32 %v1898, %v1890
        %v1900 = vadd.f32 %v1899, %v1894
        %v1901 = vrot.slane %v1900, 4
        %v1902 = vadd.f32 %v1900, %v1901
        %v1903 = vrot.slane %v1902, 2
        %v1904 = vadd.f32 %v1902, %v1903
        %v1905 = vrot.slane %v1904, 1
        %v1906 = vadd.f32 %v1904, %v1905
        %v1907 = vadd.f32 %v1883, %v1887
        %v1908 = vadd.f32 %v1907, %v1891
        %v1909 = vadd.f32 %v1908, %v1895
        %v1910 = vrot.slane %v1909, 4
        %v1911 = vadd.f32 %v1909, %v1910
        %v1912 = vrot.slane %v1911, 2
        %v1913 = vadd.f32 %v1911, %v1912
        %v1914 = vrot.slane %v1913, 1
        %v1915 = vadd.f32 %v1913, %v1914
        %v1916 = vadd.f32 %v1884, %v1888
        %v1917 = vadd.f32 %v1916, %v1892
        %v1918 = vadd.f32 %v1917, %v1896
        %v1919 = vrot.slane %v1918, 4
        %v1920 = vadd.f32 %v1918, %v1919
        %v1921 = vrot.slane %v1920, 2
        %v1922 = vadd.f32 %v1920, %v1921
        %v1923 = vrot.slane %v1922, 1
        %v1924 = vadd.f32 %v1922, %v1923
        %v1925 = vadd.f32 %v1885, %v1889
        %v1926 = vadd.f32 %v1925, %v1893
        %v1927 = vadd.f32 %v1926, %v1897
        %v1928 = vrot.slane %v1927, 4
        %v1929 = vadd.f32 %v1927, %v1928
        %v1930 = vrot.slane %v1929, 2
        %v1931 = vadd.f32 %v1929, %v1930
        %v1932 = vrot.slane %v1931, 1
        %v1933 = vadd.f32 %v1931, %v1932
        %v1934 = vld [vmem:[#allocation2] sm:$0x1]
        %1936 = vset.pattern.permute.xlu0 0
        %1937 = vperm.xlu0 %1936, %v1934
        %v1938 = vpop.permute.xlu0 %1937
        %v1940 = vperm.slane %v1938, 0
        %v1941 = vadd.f32 %v1906, %v1940
        %v1942 = vadd.f32 %v1915, %v1940
        %v1943 = vadd.f32 %v1924, %v1940
        %v1944 = vadd.f32 %v1933, %v1940
        %v1945 = vmax.f32 %v1941, 0.0
        %v1946 = vmax.f32 %v1942, 0.0
        %v1947 = vmax.f32 %v1943, 0.0
        %v1948 = vmax.f32 %v1944, 0.0
        %v1949 = vsub.f32 10.0, %v1945
        %v1950 = vsub.f32 10.0, %v1946
        %v1951 = vsub.f32 10.0, %v1947
        %v1952 = vsub.f32 10.0, %v1948
        %v1957 = vrot.slane %v1950, 7
        %v1958 = vrot.slane %v1951, 6
        %v1959 = vrot.slane %v1952, 5
        %vm1960 = vcmask 1040384
        %v1961 = vsel %vm1960, %v1949, %v1957
        %vm1962 = vcmask 1042434
        %v1963 = vsel %vm1962, %v1958, %v1959
        %vm1964 = vcmask 1041408
        %v1965 = vsel %vm1964, %v1961, %v1963
        %v1967 = vlaneseq
        %vm1968 = vcmp.ge.s32.totalorder %v1967, 0
        %vm1969 = vcmp.lt.s32.totalorder %v1967, 512
        %vm1970 = vmand %vm1968, %vm1969
        %1971 = vst.msk [vmem:[%s355] sm:$0xf] %vm1970, %v1965
        %s1972 = sand.u32 %s249, 1
        %s1973 = scalar_lea.sflag [#allocation4], %s1972
        %s1974 = sand.u32 %s249, 1
        %s1975 = smul.addr %s1974, 4
        %s1976 = scalar_lea.vmem [#allocation3], %s1975
        // Predicated region
        $region61: #{tpu_custom_call.1} parent=59 // pred_check
          %p1977 = pneg %p259
        $region62: #{tpu_custom_call.1} parent=59 // pred_check_branch
          %1979 = sbr.rel (%p1977) target = $region64
        $region63: #{tpu_custom_call.1} parent=59 // pred_region
          %s1980 = smul.u32 4, %s26
          %1982 = vsyncadd %s1973, 0
          %s1983 = scalar_lea.hbm %s10, %s1980
          %s1985 = sshll.u32 %s1976, 4
          %s1986 = int_to_ptr.vmem [resolvable:$true] %s1985
          %s1987 = sshll.u32 %s1983, 4
          %s1988 = int_to_ptr.hbm [resolvable:$true] %s1987
          %1990 = dma.vmem_to_hbm [thread:$0]  %s1986, 64, %s1988, %s1973
        $region64: #{tpu_custom_call.1} parent=59 // pred_fallthru
          _
      $region60: #{tpu_custom_call.1} parent=5 // pred_fallthru
        _
      %p1991 = scmp.le.s32.totalorder 2, %s21
      // Predicated region
      $region65: #{tpu_custom_call.1} parent=5 // pred_check
        %p1992 = pneg %p1991
      $region66: #{tpu_custom_call.1} parent=5 // pred_check_branch
        %1994 = sbr.rel (%p1992) target = $region68
      $region67: #{tpu_custom_call.1} parent=5 // pred_region
        %s1995 = ssub.s32 %s21, 2
        // Predicated region
        $region69: #{tpu_custom_call.1} parent=67 // pred_check
          %p1996 = pneg %p265
        $region70: #{tpu_custom_call.1} parent=67 // pred_check_branch
          %1998 = sbr.rel (%p1996) target = $region72
        $region71: #{tpu_custom_call.1} parent=67 // pred_region
          %s1999 = sand.u32 %s250, 1
          %s2000 = scalar_lea.sflag [#allocation4], %s1999
          %s2001 = sand.u32 %s250, 1
          %s2002 = smul.addr %s2001, 4
          %s2003 = scalar_lea.vmem [#allocation3], %s2002
          %2005 = dma.done %s2000, 64
        $region72: #{tpu_custom_call.1} parent=67 // pred_fallthru
          _
      $region68: #{tpu_custom_call.1} parent=5 // pred_fallthru
        _
    $region6: #{tpu_custom_call.1} parent=1 // loop_footer
      %s25 = sadd.s32 1, %s21
    $region7: #{tpu_custom_call.1} parent=1 // loop_footer_branch
      %20 = sbr.rel target = $region3
    $region8: #{tpu_custom_call.1} parent=1 // loop_exit
      _
    %2006 = vsyncpa [#allocation4], 1
    %s2007 = scalar_lea.sflag [#allocation4], 1
    %2008 = vsyncpa %s2007, 1

</llo_original>
